<compile_context>
chip_gen: v6e
topology: v6e:2x2x1
jax: 0.10.0
libtpu: 0.0.40
codegen_flags: <defaults>
</compile_context>

<pallas_src>
import functools
import math

import jax
import jax.numpy as jnp
from jax.experimental import pallas as pl
from jax.experimental.pallas import tpu as pltpu

BN_EPS = 1e-5

# Output-tile sizes (sweepable per generation; 512x512 bf16 tiles keep the
# whole call under ~5 MiB of VMEM, inside even v5e's 16 MiB scoped default).
TM = 512   # rows (sublanes) per output tile
TN = 512   # channels (lanes) per output tile


def _round_up(v, m):
    return ((v + m - 1) // m) * m


# ----------------------------------------------------------------------------
# Pallas kernels
# ----------------------------------------------------------------------------
def _make_fused_kernel(has_prelu, has_residual):
    """Tiled matmul over taps + BN-affine (+PReLU) (+residual) epilogue."""

    def kernel(*refs):
        x_ref, w_ref, scale_ref, shift_ref = refs[:4]
        i = 4
        alpha_ref = None
        res_ref = None
        if has_prelu:
            alpha_ref = refs[i]; i += 1
        if has_residual:
            res_ref = refs[i]; i += 1
        out_ref = refs[i]
        acc_ref = refs[i + 1]

        t = pl.program_id(2)

        @pl.when(t == 0)
        def _init():
            acc_ref[...] = jnp.zeros_like(acc_ref)

        # bf16 x bf16 -> f32 accumulate on the MXU.
        acc_ref[...] += jnp.dot(x_ref[0], w_ref[0],
                                preferred_element_type=jnp.float32)

        @pl.when(t == pl.num_programs(2) - 1)
        def _epilogue():
            acc = acc_ref[...] * scale_ref[...] + shift_ref[...]   # folded BN / bias
            if has_prelu:
                acc = jnp.where(acc >= 0.0, acc, acc * alpha_ref[...])
            if has_residual:
                acc = acc + res_ref[...].astype(jnp.float32)
            out_ref[...] = acc.astype(out_ref.dtype)

    return kernel


_KERNELS = {(p, r): _make_fused_kernel(p, r)
            for p in (False, True) for r in (False, True)}


def _fused_matmul(x, w, scale, shift, alpha=None, residual=None, *,
                  has_prelu=False, has_residual=False,
                  out_dtype=jnp.bfloat16):
    """out = [prelu]((sum_t x[t] @ w[t]) * scale + shift) [+ residual].

    x: (T, M, K), w: (T, K, N), scale/shift/alpha: (1, N) f32, residual: (M, N).
    Grid is (M tiles, N tiles, T); T (the 9 conv taps) is the reduction axis.
    """
    T, M, K = x.shape
    N = w.shape[2]

    tn = min(TN, N)
    assert N % tn == 0, "IR-50 channel counts are multiples of the N tile"
    tm = _round_up(M, 8) if M <= TM else TM
    Mp = _round_up(M, tm)

    x = x.astype(jnp.bfloat16)
    w = w.astype(jnp.bfloat16)
    if Mp != M:
        x = jnp.pad(x, ((0, 0), (0, Mp - M), (0, 0)))

    vec_spec = pl.BlockSpec((1, tn), lambda i, j, t: (0, j))
    inputs = [x, w, scale, shift]
    in_specs = [
        pl.BlockSpec((1, tm, K), lambda i, j, t: (t, i, 0)),   # activations
        pl.BlockSpec((1, K, tn), lambda i, j, t: (t, 0, j)),   # weights
        vec_spec,                                              # BN scale / 1
        vec_spec,                                              # BN shift / bias
    ]
    if has_prelu:
        inputs.append(alpha)
        in_specs.append(vec_spec)
    if has_residual:
        r = residual.astype(jnp.bfloat16)
        if Mp != M:
            r = jnp.pad(r, ((0, Mp - M), (0, 0)))
        inputs.append(r)
        in_specs.append(pl.BlockSpec((tm, tn), lambda i, j, t: (i, j)))

    out = pl.pallas_call(
        _KERNELS[(has_prelu, has_residual)],
        out_shape=jax.ShapeDtypeStruct((Mp, N), out_dtype),
        grid_spec=pltpu.PrefetchScalarGridSpec(
            num_scalar_prefetch=0,
            grid=(Mp // tm, N // tn, T),
            in_specs=in_specs,
            out_specs=pl.BlockSpec((tm, tn), lambda i, j, t: (i, j)),
            scratch_shapes=[pltpu.VMEM((tm, tn), jnp.float32)]),
        compiler_params=pltpu.CompilerParams(
            dimension_semantics=("parallel", "parallel", "arbitrary")),
    )(*inputs)
    return out[:M] if Mp != M else out


matmul_fused = jax.jit(
    _fused_matmul,
    static_argnames=("has_prelu", "has_residual", "out_dtype"))


def _pool_kernel(x_ref, out_ref):
    inv = 1.0 / x_ref.shape[1]
    out_ref[...] = jnp.sum(x_ref[...].astype(jnp.float32), axis=1) * inv


@jax.jit
def avg_pool(x):
    """AdaptiveAvgPool2d((1,1)): (N, H*W, C) -> (N, C) in f32 (tiny tensor)."""
    N, HW, C = x.shape
    return pl.pallas_call(
        _pool_kernel,
        out_shape=jax.ShapeDtypeStruct((N, C), jnp.float32),
        in_specs=[pl.BlockSpec(memory_space=pltpu.MemorySpace.VMEM)],
        out_specs=pl.BlockSpec(memory_space=pltpu.MemorySpace.VMEM),
    )(x)


# ----------------------------------------------------------------------------
# JAX glue: im2col (with fused pre-BN affine), conv wrapper, structure, params
# ----------------------------------------------------------------------------
def im2col(x, stride, scale=None, shift=None, collapse=False):
    """3x3 / pad=1 patch extraction, optionally fused with a per-channel affine
    (eval-mode BatchNorm applied *before* zero padding — exact).

    collapse=False -> (9, N*OH*OW, C)   bf16  (taps feed the reduction grid axis)
    collapse=True  -> (1, N*OH*OW, 9*C) bf16  (single slab; used for tiny C_in)
    """
    N, H, W, C = x.shape
    x = x.astype(jnp.float32)
    if scale is not None:
        x = x * scale.reshape(1, 1, 1, C) + shift.reshape(1, 1, 1, C)
    xp = jnp.pad(x, ((0, 0), (1, 1), (1, 1), (0, 0)))
    OH = (H - 1) // stride + 1
    OW = (W - 1) // stride + 1
    taps = []
    for ky in range(3):
        for kx in range(3):
            taps.append(xp[:, ky:ky + (OH - 1) * stride + 1:stride,
                           kx:kx + (OW - 1) * stride + 1:stride, :])
    if collapse:
        p = jnp.stack(taps, axis=3).reshape(1, N * OH * OW, 9 * C)
    else:
        p = jnp.stack(taps, axis=0).reshape(9, N * OH * OW, C)
    return p.astype(jnp.bfloat16), (N, OH, OW)


@functools.partial(jax.jit, static_argnames=("stride", "collapse", "has_prelu",
                                             "has_residual", "out_dtype"))
def conv3x3(x, w, scale, shift, alpha=None, residual=None,
            bn_in_scale=None, bn_in_shift=None, *, stride, collapse=False,
            has_prelu=False, has_residual=False, out_dtype=jnp.bfloat16):
    """3x3/pad=1 conv (+optional leading BN) + BN/PReLU/residual epilogue."""
    patches, (N, OH, OW) = im2col(x, stride, bn_in_scale, bn_in_shift, collapse)
    y = _fused_matmul(patches, w, scale, shift, alpha, residual,
                      has_prelu=has_prelu, has_residual=has_residual,
                      out_dtype=out_dtype)
    return y.reshape(N, OH, OW, -1)


def get_blocks_50():
    """(in_channel, depth, stride) for every bottleneck of the IR-50 body."""
    cfg = [(64, 64, 3), (64, 128, 4), (128, 256, 14), (256, 512, 3)]
    blocks = []
    for in_c, depth, n in cfg:
        blocks.append((in_c, depth, 2))
        for _ in range(n - 1):
            blocks.append((depth, depth, 1))
    return blocks


def init_params(key, input_nc=3):
    keys = iter(jax.random.split(key, 4096))
    nxt = lambda: next(keys)

    def conv3_w(cin, cout, collapse=False):
        std = 0.5 * math.sqrt(2.0 / (9 * cin))
        w = std * jax.random.normal(nxt(), (3, 3, cin, cout), jnp.float32)
        if collapse:
            return w.reshape(1, 9 * cin, cout)   # (ky,kx,ci) major, 1 tap slab
        return w.reshape(9, cin, cout)           # per-tap weights

    def bn_fold(c):
        gamma = 1.0 + 0.1 * jax.random.normal(nxt(), (c,), jnp.float32)
        beta = 0.1 * jax.random.normal(nxt(), (c,), jnp.float32)
        mean = 0.1 * jax.random.normal(nxt(), (c,), jnp.float32)
        var = 1.0 + 0.5 * jax.random.uniform(nxt(), (c,), jnp.float32)
        scale = gamma / jnp.sqrt(var + BN_EPS)
        shift = beta - mean * scale
        return scale.reshape(1, c), shift.reshape(1, c)

    def prelu_alpha(c):
        return 0.25 + 0.01 * jax.random.normal(nxt(), (1, c), jnp.float32)

    params = {}
    s, b = bn_fold(64)
    params['input'] = dict(w=conv3_w(input_nc, 64, collapse=True),
                           scale=s, shift=b, alpha=prelu_alpha(64))

    body = []
    for in_c, depth, stride in get_blocks_50():
        bn1_s, bn1_b = bn_fold(in_c)
        bn2_s, bn2_b = bn_fold(depth)
        blk = dict(in_c=in_c, depth=depth, stride=stride,
                   bn1_scale=bn1_s, bn1_shift=bn1_b,
                   conv1_w=conv3_w(in_c, depth),
                   alpha=prelu_alpha(depth),
                   conv2_w=conv3_w(depth, depth),
                   bn2_scale=bn2_s, bn2_shift=bn2_b,
                   ones=jnp.ones((1, depth), jnp.float32),
                   zeros=jnp.zeros((1, depth), jnp.float32))
        if in_c != depth:
            std = 1.0 / math.sqrt(in_c)
            blk['sc_w'] = std * jax.random.normal(nxt(), (1, in_c, depth),
                                                  jnp.float32)
            blk['sc_scale'], blk['sc_shift'] = bn_fold(depth)
        else:
            blk['sc_w'] = None
        body.append(blk)
    params['body'] = body

    # EqualLinear(512, 512, lr_mul=1): out = x @ (W * 1/sqrt(512)).T + bias
    w = jax.random.normal(nxt(), (512, 512), jnp.float32)
    eq_scale = 1.0 / math.sqrt(512)
    params['linear'] = dict(w_eff=(w * eq_scale).T.reshape(1, 512, 512),
                            bias=jnp.zeros((1, 512), jnp.float32),
                            ones=jnp.ones((1, 512), jnp.float32))
    return params


# ----------------------------------------------------------------------------
# Forward pass
# ----------------------------------------------------------------------------
def bottleneck_ir(x, blk):
    """res = BN -> Conv3x3(s1) -> PReLU -> Conv3x3(stride) -> BN; out = res + shortcut."""
    N, H, W, in_c = x.shape
    depth, stride = blk['depth'], blk['stride']

    # shortcut: MaxPool2d(1, stride) if in==depth else Conv1x1(stride)+BN
    xs = x[:, ::stride, ::stride, :]
    if blk['sc_w'] is None:
        shortcut = xs.reshape(-1, depth)                       # bf16 identity
    else:
        shortcut = matmul_fused(xs.reshape(1, -1, in_c), blk['sc_w'],
                                blk['sc_scale'], blk['sc_shift'])

    # residual branch (BN1 folded into im2col; PReLU fused into conv1 epilogue)
    r1 = conv3x3(x, blk['conv1_w'], blk['ones'], blk['zeros'],
                 alpha=blk['alpha'],
                 bn_in_scale=blk['bn1_scale'], bn_in_shift=blk['bn1_shift'],
                 stride=1, has_prelu=True)
    out = conv3x3(r1, blk['conv2_w'], blk['bn2_scale'], blk['bn2_shift'],
                  residual=shortcut, stride=stride, has_residual=True)
    return out


def forward(x_nchw, params):
    # PyTorch conv input is NCHW; convert to NHWC for lane-friendly layout.
    x = jnp.transpose(x_nchw, (0, 2, 3, 1)).astype(jnp.float32)

    # input_layer: Conv3x3(input_nc->64, s1, p1, no bias) + BN + PReLU (fused).
    # K = 9*input_nc = 27 — tiny, keep a single collapsed slab (not worth tiling).
    p = params['input']
    x = conv3x3(x, p['w'], p['scale'], p['shift'], alpha=p['alpha'],
                stride=1, collapse=True, has_prelu=True)

    # body: 24 IR bottlenecks (IR-50), bf16 activations between layers
    for blk in params['body']:
        x = bottleneck_ir(x, blk)

    # output_pool: AdaptiveAvgPool2d((1,1)), then view(-1, 512)
    N, H, W, C = x.shape
    pooled = avg_pool(x.reshape(N, H * W, C))                  # (N, 512) f32

    # EqualLinear(512, 512) — final output stays f32
    lp = params['linear']
    out = matmul_fused(pooled.reshape(1, N, 512), lp['w_eff'], lp['ones'],
                       lp['bias'], out_dtype=jnp.float32)
    return out


# TODO(synk): BatchNorm is implemented in eval mode (folded running stats);
# PyTorch's default train-mode batch statistics are not reproduced.

if __name__ == "__main__":
    key = jax.random.PRNGKey(0)
    pkey, xkey = jax.random.split(key)
    params = init_params(pkey, input_nc=3)
    x = jax.random.normal(xkey, (2, 3, 16, 16), dtype=jnp.float32)  # NCHW input
    out = forward(x, params)
    out = jax.block_until_ready(out)
    assert out.shape == (2, 512), out.shape
    assert bool(jnp.all(jnp.isfinite(out)))
    print("KERNEL_OK")
</pallas_src>

<mosaic_0001>
module attributes {stable_mosaic.version = 11 : i64} {
  func.func @kernel(%arg0: i32, %arg1: i32, %arg2: i32, %arg3: memref<1x512x27xbf16, #tpu.memory_space<vmem>>, %arg4: memref<1x27x64xbf16, #tpu.memory_space<vmem>>, %arg5: memref<1x64xf32, #tpu.memory_space<vmem>>, %arg6: memref<1x64xf32, #tpu.memory_space<vmem>>, %arg7: memref<1x64xf32, #tpu.memory_space<vmem>>, %arg8: memref<512x64xbf16, #tpu.memory_space<vmem>>, %arg9: memref<512x64xf32, #tpu.memory_space<vmem>>) attributes {dimension_semantics = [#tpu.dimension_semantics<parallel>, #tpu.dimension_semantics<parallel>, #tpu.dimension_semantics<arbitrary>], iteration_bounds = array<i64: 1, 1, 1>, scalar_prefetch = 0 : i64, scratch_operands = 1 : i64, tpu.core_type = #tpu.core_type<tc>, window_params = [{transform_indices = @transform_0, window_bounds = array<i64: 1, 512, 27>}, {transform_indices = @transform_1, window_bounds = array<i64: 1, 27, 64>}, {transform_indices = @transform_2, window_bounds = array<i64: 1, 64>}, {transform_indices = @transform_3, window_bounds = array<i64: 1, 64>}, {transform_indices = @transform_4, window_bounds = array<i64: 1, 64>}, {transform_indices = @transform_5, window_bounds = array<i64: 512, 64>}]} {
    %c0_i32 = arith.constant 0 : i32
    %0 = arith.cmpi eq, %arg2, %c0_i32 : i32
    %1 = arith.extui %0 : i1 to i32
    %c0_i32_0 = arith.constant 0 : i32
    %2 = arith.cmpi ne, %1, %c0_i32_0 : i32
    scf.if %2 {
      %cst_12 = arith.constant 0.000000e+00 : f32
      %14 = vector.broadcast %cst_12 : f32 to vector<512x64xf32>
      %c0_13 = arith.constant 0 : index
      %c0_14 = arith.constant 0 : index
      %15 = vector.load %arg9[%c0_13, %c0_14] : memref<512x64xf32, #tpu.memory_space<vmem>>, vector<512x64xf32>
      tpu.vector_store %arg9[%c0_13, %c0_14], %14 {strides = array<i32>} : memref<512x64xf32, #tpu.memory_space<vmem>>, vector<512x64xf32>,
    } else {
    }
    %c0 = arith.constant 0 : index
    %c0_1 = arith.constant 0 : index
    %3 = vector.load %arg9[%c0, %c0_1] : memref<512x64xf32, #tpu.memory_space<vmem>>, vector<512x64xf32>
    %c0_2 = arith.constant 0 : index
    %c0_3 = arith.constant 0 : index
    %c0_4 = arith.constant 0 : index
    %4 = vector.load %arg3[%c0_2, %c0_3, %c0_4] : memref<1x512x27xbf16, #tpu.memory_space<vmem>>, vector<1x512x27xbf16>
    %5 = vector.shape_cast %4 : vector<1x512x27xbf16> to vector<512x27xbf16>
    %c0_5 = arith.constant 0 : index
    %c0_6 = arith.constant 0 : index
    %c0_7 = arith.constant 0 : index
    %6 = vector.load %arg4[%c0_5, %c0_6, %c0_7] : memref<1x27x64xbf16, #tpu.memory_space<vmem>>, vector<1x27x64xbf16>
    %7 = vector.shape_cast %6 : vector<1x27x64xbf16> to vector<27x64xbf16>
    %cst = arith.constant dense<0.000000e+00> : vector<512x64xf32>
    %8 = tpu.matmul %5, %7, %cst {dimension_numbers = #tpu.dot_dimension_numbers<[1], [0], [0], [1], [0, 0, 1, 1], [], []>} : vector<512x27xbf16>, vector<27x64xbf16>, vector<512x64xf32> -> vector<512x64xf32>
    %9 = arith.addf %3, %8 : vector<512x64xf32>
    %c0_8 = arith.constant 0 : index
    %c0_9 = arith.constant 0 : index
    %10 = vector.load %arg9[%c0_8, %c0_9] : memref<512x64xf32, #tpu.memory_space<vmem>>, vector<512x64xf32>
    tpu.vector_store %arg9[%c0_8, %c0_9], %9 {strides = array<i32>} : memref<512x64xf32, #tpu.memory_space<vmem>>, vector<512x64xf32>,
    %c0_i32_10 = arith.constant 0 : i32
    %11 = arith.cmpi eq, %arg2, %c0_i32_10 : i32
    %12 = arith.extui %11 : i1 to i32
    %c0_i32_11 = arith.constant 0 : i32
    %13 = arith.cmpi ne, %12, %c0_i32_11 : i32
    scf.if %13 {
      %c0_12 = arith.constant 0 : index
      %c0_13 = arith.constant 0 : index
      %14 = vector.load %arg9[%c0_12, %c0_13] : memref<512x64xf32, #tpu.memory_space<vmem>>, vector<512x64xf32>
      %c0_14 = arith.constant 0 : index
      %c0_15 = arith.constant 0 : index
      %15 = vector.load %arg5[%c0_14, %c0_15] : memref<1x64xf32, #tpu.memory_space<vmem>>, vector<1x64xf32>
      %16 = vector.broadcast %15 : vector<1x64xf32> to vector<512x64xf32>
      %17 = arith.mulf %14, %16 : vector<512x64xf32>
      %c0_16 = arith.constant 0 : index
      %c0_17 = arith.constant 0 : index
      %18 = vector.load %arg6[%c0_16, %c0_17] : memref<1x64xf32, #tpu.memory_space<vmem>>, vector<1x64xf32>
      %19 = vector.broadcast %18 : vector<1x64xf32> to vector<512x64xf32>
      %20 = arith.addf %17, %19 : vector<512x64xf32>
      %cst_18 = arith.constant 0.000000e+00 : f32
      %21 = vector.broadcast %cst_18 : f32 to vector<512x64xf32>
      %22 = arith.cmpf oge, %20, %21 : vector<512x64xf32>
      %c0_19 = arith.constant 0 : index
      %c0_20 = arith.constant 0 : index
      %23 = vector.load %arg7[%c0_19, %c0_20] : memref<1x64xf32, #tpu.memory_space<vmem>>, vector<1x64xf32>
      %24 = vector.broadcast %23 : vector<1x64xf32> to vector<512x64xf32>
      %25 = arith.mulf %20, %24 : vector<512x64xf32>
      %26 = arith.select %22, %20, %25 : vector<512x64xi1>, vector<512x64xf32>
      %27 = arith.truncf %26 : vector<512x64xf32> to vector<512x64xbf16>
      %c0_21 = arith.constant 0 : index
      %c0_22 = arith.constant 0 : index
      %28 = vector.load %arg8[%c0_21, %c0_22] : memref<512x64xbf16, #tpu.memory_space<vmem>>, vector<512x64xbf16>
      tpu.vector_store %arg8[%c0_21, %c0_22], %27 {strides = array<i32>} : memref<512x64xbf16, #tpu.memory_space<vmem>>, vector<512x64xbf16>,
    } else {
    }
    return
  }
  func.func @transform_0(%arg0: i32, %arg1: i32, %arg2: i32) -> (i32, i32, i32) {
    %c0_i32 = arith.constant 0 : i32
    %c0_i32_0 = arith.constant 0 : i32
    return %arg2, %arg0, %c0_i32 : i32, i32, i32
  }
  func.func @transform_1(%arg0: i32, %arg1: i32, %arg2: i32) -> (i32, i32, i32) {
    %c0_i32 = arith.constant 0 : i32
    %c0_i32_0 = arith.constant 0 : i32
    return %arg2, %c0_i32, %arg1 : i32, i32, i32
  }
  func.func @transform_2(%arg0: i32, %arg1: i32, %arg2: i32) -> (i32, i32) {
    %c0_i32 = arith.constant 0 : i32
    %c0_i32_0 = arith.constant 0 : i32
    return %c0_i32, %arg1 : i32, i32
  }
  func.func @transform_3(%arg0: i32, %arg1: i32, %arg2: i32) -> (i32, i32) {
    %c0_i32 = arith.constant 0 : i32
    %c0_i32_0 = arith.constant 0 : i32
    return %c0_i32, %arg1 : i32, i32
  }
  func.func @transform_4(%arg0: i32, %arg1: i32, %arg2: i32) -> (i32, i32) {
    %c0_i32 = arith.constant 0 : i32
    %c0_i32_0 = arith.constant 0 : i32
    return %c0_i32, %arg1 : i32, i32
  }
  func.func @transform_5(%arg0: i32, %arg1: i32, %arg2: i32) -> (i32, i32) {
    %c0_i32 = arith.constant 0 : i32
    return %arg0, %arg1 : i32, i32
  }
}

</mosaic_0001>

<llo_original>
// kernel: conv3x3.1
$region0: #{conv3x3.1}
  #allocation0 [shape = 'u32[]', space=smem, size = 0x4, offset = 0x4, fixed_abs, tag = 'smem constant byte address 0x4 - core index']
  #allocation1 [shape = 'u32[144,128]{1,0:T(1,128)}', space=vmem, size = 0x12000, scoped, tag = 'internal scratch']
  #allocation2 [shape = 'f32[512,64]{1,0:T(8,128)}', space=vmem, size = 0x40000, scoped, tag = 'scratch operand']
  %s0 = inlined_call_operand.vmem [shape: bf16[1,512,27], index: 0, kind: input, shape index: {}]
  %s1 = inlined_call_operand.vmem [shape: bf16[1,27,64], index: 1, kind: input, shape index: {}]
  %s2 = inlined_call_operand.vmem [shape: f32[1,64], index: 2, kind: input, shape index: {}]
  %s3 = inlined_call_operand.vmem [shape: f32[1,64], index: 3, kind: input, shape index: {}]
  %s4 = inlined_call_operand.vmem [shape: f32[1,64], index: 4, kind: input, shape index: {}]
  %s5 = inlined_call_operand.hbm [shape: bf16[512,64], index: 5, kind: output, shape index: {}]
  %s6 = sld [smem:[#allocation0]]
  $region38: #{conv3x3.1} parent=0
    _
  %s8 = ssub.s32 1, %s6
  %s9 = scalar_select 0, %s8, %s6
  $region1: #{conv3x3.1} parent=0
    #allocation3 [shape = 'u8[131072]{0}', space=vmem, size = 0x20000, scoped, tag = 'output window, operand 0, single buffered']
    #allocation4 [shape = 's32[1]{0}', space=sflag, size = 0x4, scoped, tag = 'scoped memory for conv3x3.1']
    %10 = vsyncpa [#allocation4], 0
    // Predicated region
    $region2: #{conv3x3.1} parent=1 // pred_check
      _
    $region3: #{conv3x3.1} parent=1 // pred_check_branch
      %12 = sbr.rel (0) target = $region5
    $region4: #{conv3x3.1} parent=1 // pred_region
      _
    $region5: #{conv3x3.1} parent=1 // pred_fallthru
      _
    // Predicated region
    $region6: #{conv3x3.1} parent=1 // pred_check
      _
    $region7: #{conv3x3.1} parent=1 // pred_check_branch
      %14 = sbr.rel (0) target = $region9
    $region8: #{conv3x3.1} parent=1 // pred_region
      _
    $region9: #{conv3x3.1} parent=1 // pred_fallthru
      _
    // Predicated region
    $region10: #{conv3x3.1} parent=1 // pred_check
      _
    $region11: #{conv3x3.1} parent=1 // pred_check_branch
      %16 = sbr.rel (0) target = $region13
    $region12: #{conv3x3.1} parent=1 // pred_region
      _
    $region13: #{conv3x3.1} parent=1 // pred_fallthru
      _
    // Predicated region
    $region14: #{conv3x3.1} parent=1 // pred_check
      _
    $region15: #{conv3x3.1} parent=1 // pred_check_branch
      %18 = sbr.rel (0) target = $region17
    $region16: #{conv3x3.1} parent=1 // pred_region
      _
    $region17: #{conv3x3.1} parent=1 // pred_fallthru
      _
    // Predicated region
    $region18: #{conv3x3.1} parent=1 // pred_check
      _
    $region19: #{conv3x3.1} parent=1 // pred_check_branch
      %20 = sbr.rel (0) target = $region21
    $region20: #{conv3x3.1} parent=1 // pred_region
      _
    $region21: #{conv3x3.1} parent=1 // pred_fallthru
      _
    %p22 = scmp.eq.s32.totalorder 0, 0
    // Predicated region
    $region22: #{conv3x3.1} parent=1 // pred_check
      %p23 = pneg %p22
    $region23: #{conv3x3.1} parent=1 // pred_check_branch
      %25 = sbr.rel (%p23) target = $region25
    $region24: #{conv3x3.1} parent=1 // pred_region
      %vm26 = vcmask 523264
      %27 = vst.msk [vmem:[#allocation2] sm:$0xff] %vm26, 0.0
      %28 = vst.msk [vmem:[#allocation2 + $0x8] sm:$0xff] %vm26, 0.0
      %29 = vst.msk [vmem:[#allocation2 + $0x10] sm:$0xff] %vm26, 0.0
      %30 = vst.msk [vmem:[#allocation2 + $0x18] sm:$0xff] %vm26, 0.0
      %31 = vst.msk [vmem:[#allocation2 + $0x20] sm:$0xff] %vm26, 0.0
      %32 = vst.msk [vmem:[#allocation2 + $0x28] sm:$0xff] %vm26, 0.0
      %33 = vst.msk [vmem:[#allocation2 + $0x30] sm:$0xff] %vm26, 0.0
      %34 = vst.msk [vmem:[#allocation2 + $0x38] sm:$0xff] %vm26, 0.0
      %35 = vst.msk [vmem:[#allocation2 + $0x40] sm:$0xff] %vm26, 0.0
      %36 = vst.msk [vmem:[#allocation2 + $0x48] sm:$0xff] %vm26, 0.0
      %37 = vst.msk [vmem:[#allocation2 + $0x50] sm:$0xff] %vm26, 0.0
      %38 = vst.msk [vmem:[#allocation2 + $0x58] sm:$0xff] %vm26, 0.0
      %39 = vst.msk [vmem:[#allocation2 + $0x60] sm:$0xff] %vm26, 0.0
      %40 = vst.msk [vmem:[#allocation2 + $0x68] sm:$0xff] %vm26, 0.0
      %41 = vst.msk [vmem:[#allocation2 + $0x70] sm:$0xff] %vm26, 0.0
      %42 = vst.msk [vmem:[#allocation2 + $0x78] sm:$0xff] %vm26, 0.0
      %43 = vst.msk [vmem:[#allocation2 + $0x80] sm:$0xff] %vm26, 0.0
      %44 = vst.msk [vmem:[#allocation2 + $0x88] sm:$0xff] %vm26, 0.0
      %45 = vst.msk [vmem:[#allocation2 + $0x90] sm:$0xff] %vm26, 0.0
      %46 = vst.msk [vmem:[#allocation2 + $0x98] sm:$0xff] %vm26, 0.0
      %47 = vst.msk [vmem:[#allocation2 + $0xa0] sm:$0xff] %vm26, 0.0
      %48 = vst.msk [vmem:[#allocation2 + $0xa8] sm:$0xff] %vm26, 0.0
      %49 = vst.msk [vmem:[#allocation2 + $0xb0] sm:$0xff] %vm26, 0.0
      %50 = vst.msk [vmem:[#allocation2 + $0xb8] sm:$0xff] %vm26, 0.0
      %51 = vst.msk [vmem:[#allocation2 + $0xc0] sm:$0xff] %vm26, 0.0
      %52 = vst.msk [vmem:[#allocation2 + $0xc8] sm:$0xff] %vm26, 0.0
      %53 = vst.msk [vmem:[#allocation2 + $0xd0] sm:$0xff] %vm26, 0.0
      %54 = vst.msk [vmem:[#allocation2 + $0xd8] sm:$0xff] %vm26, 0.0
      %55 = vst.msk [vmem:[#allocation2 + $0xe0] sm:$0xff] %vm26, 0.0
      %56 = vst.msk [vmem:[#allocation2 + $0xe8] sm:$0xff] %vm26, 0.0
      %57 = vst.msk [vmem:[#allocation2 + $0xf0] sm:$0xff] %vm26, 0.0
      %58 = vst.msk [vmem:[#allocation2 + $0xf8] sm:$0xff] %vm26, 0.0
      %59 = vst.msk [vmem:[#allocation2 + $0x100] sm:$0xff] %vm26, 0.0
      %60 = vst.msk [vmem:[#allocation2 + $0x108] sm:$0xff] %vm26, 0.0
      %61 = vst.msk [vmem:[#allocation2 + $0x110] sm:$0xff] %vm26, 0.0
      %62 = vst.msk [vmem:[#allocation2 + $0x118] sm:$0xff] %vm26, 0.0
      %63 = vst.msk [vmem:[#allocation2 + $0x120] sm:$0xff] %vm26, 0.0
      %64 = vst.msk [vmem:[#allocation2 + $0x128] sm:$0xff] %vm26, 0.0
      %65 = vst.msk [vmem:[#allocation2 + $0x130] sm:$0xff] %vm26, 0.0
      %66 = vst.msk [vmem:[#allocation2 + $0x138] sm:$0xff] %vm26, 0.0
      %67 = vst.msk [vmem:[#allocation2 + $0x140] sm:$0xff] %vm26, 0.0
      %68 = vst.msk [vmem:[#allocation2 + $0x148] sm:$0xff] %vm26, 0.0
      %69 = vst.msk [vmem:[#allocation2 + $0x150] sm:$0xff] %vm26, 0.0
      %70 = vst.msk [vmem:[#allocation2 + $0x158] sm:$0xff] %vm26, 0.0
      %71 = vst.msk [vmem:[#allocation2 + $0x160] sm:$0xff] %vm26, 0.0
      %72 = vst.msk [vmem:[#allocation2 + $0x168] sm:$0xff] %vm26, 0.0
      %73 = vst.msk [vmem:[#allocation2 + $0x170] sm:$0xff] %vm26, 0.0
      %74 = vst.msk [vmem:[#allocation2 + $0x178] sm:$0xff] %vm26, 0.0
      %75 = vst.msk [vmem:[#allocation2 + $0x180] sm:$0xff] %vm26, 0.0
      %76 = vst.msk [vmem:[#allocation2 + $0x188] sm:$0xff] %vm26, 0.0
      %77 = vst.msk [vmem:[#allocation2 + $0x190] sm:$0xff] %vm26, 0.0
      %78 = vst.msk [vmem:[#allocation2 + $0x198] sm:$0xff] %vm26, 0.0
      %79 = vst.msk [vmem:[#allocation2 + $0x1a0] sm:$0xff] %vm26, 0.0
      %80 = vst.msk [vmem:[#allocation2 + $0x1a8] sm:$0xff] %vm26, 0.0
      %81 = vst.msk [vmem:[#allocation2 + $0x1b0] sm:$0xff] %vm26, 0.0
      %82 = vst.msk [vmem:[#allocation2 + $0x1b8] sm:$0xff] %vm26, 0.0
      %83 = vst.msk [vmem:[#allocation2 + $0x1c0] sm:$0xff] %vm26, 0.0
      %84 = vst.msk [vmem:[#allocation2 + $0x1c8] sm:$0xff] %vm26, 0.0
      %85 = vst.msk [vmem:[#allocation2 + $0x1d0] sm:$0xff] %vm26, 0.0
      %86 = vst.msk [vmem:[#allocation2 + $0x1d8] sm:$0xff] %vm26, 0.0
      %87 = vst.msk [vmem:[#allocation2 + $0x1e0] sm:$0xff] %vm26, 0.0
      %88 = vst.msk [vmem:[#allocation2 + $0x1e8] sm:$0xff] %vm26, 0.0
      %89 = vst.msk [vmem:[#allocation2 + $0x1f0] sm:$0xff] %vm26, 0.0
      %90 = vst.msk [vmem:[#allocation2 + $0x1f8] sm:$0xff] %vm26, 0.0
    $region25: #{conv3x3.1} parent=1 // pred_fallthru
      _
    %v91 = vld [vmem:[#allocation2] sm:$0xff]
    %v92 = vld [vmem:[#allocation2 + $0x8] sm:$0xff]
    %v93 = vld [vmem:[#allocation2 + $0x10] sm:$0xff]
    %v94 = vld [vmem:[#allocation2 + $0x18] sm:$0xff]
    %v95 = vld [vmem:[#allocation2 + $0x20] sm:$0xff]
    %v96 = vld [vmem:[#allocation2 + $0x28] sm:$0xff]
    %v97 = vld [vmem:[#allocation2 + $0x30] sm:$0xff]
    %v98 = vld [vmem:[#allocation2 + $0x38] sm:$0xff]
    %v99 = vld [vmem:[#allocation2 + $0x40] sm:$0xff]
    %v100 = vld [vmem:[#allocation2 + $0x48] sm:$0xff]
    %v101 = vld [vmem:[#allocation2 + $0x50] sm:$0xff]
    %v102 = vld [vmem:[#allocation2 + $0x58] sm:$0xff]
    %v103 = vld [vmem:[#allocation2 + $0x60] sm:$0xff]
    %v104 = vld [vmem:[#allocation2 + $0x68] sm:$0xff]
    %v105 = vld [vmem:[#allocation2 + $0x70] sm:$0xff]
    %v106 = vld [vmem:[#allocation2 + $0x78] sm:$0xff]
    %v107 = vld [vmem:[#allocation2 + $0x80] sm:$0xff]
    %v108 = vld [vmem:[#allocation2 + $0x88] sm:$0xff]
    %v109 = vld [vmem:[#allocation2 + $0x90] sm:$0xff]
    %v110 = vld [vmem:[#allocation2 + $0x98] sm:$0xff]
    %v111 = vld [vmem:[#allocation2 + $0xa0] sm:$0xff]
    %v112 = vld [vmem:[#allocation2 + $0xa8] sm:$0xff]
    %v113 = vld [vmem:[#allocation2 + $0xb0] sm:$0xff]
    %v114 = vld [vmem:[#allocation2 + $0xb8] sm:$0xff]
    %v115 = vld [vmem:[#allocation2 + $0xc0] sm:$0xff]
    %v116 = vld [vmem:[#allocation2 + $0xc8] sm:$0xff]
    %v117 = vld [vmem:[#allocation2 + $0xd0] sm:$0xff]
    %v118 = vld [vmem:[#allocation2 + $0xd8] sm:$0xff]
    %v119 = vld [vmem:[#allocation2 + $0xe0] sm:$0xff]
    %v120 = vld [vmem:[#allocation2 + $0xe8] sm:$0xff]
    %v121 = vld [vmem:[#allocation2 + $0xf0] sm:$0xff]
    %v122 = vld [vmem:[#allocation2 + $0xf8] sm:$0xff]
    %v123 = vld [vmem:[#allocation2 + $0x100] sm:$0xff]
    %v124 = vld [vmem:[#allocation2 + $0x108] sm:$0xff]
    %v125 = vld [vmem:[#allocation2 + $0x110] sm:$0xff]
    %v126 = vld [vmem:[#allocation2 + $0x118] sm:$0xff]
    %v127 = vld [vmem:[#allocation2 + $0x120] sm:$0xff]
    %v128 = vld [vmem:[#allocation2 + $0x128] sm:$0xff]
    %v129 = vld [vmem:[#allocation2 + $0x130] sm:$0xff]
    %v130 = vld [vmem:[#allocation2 + $0x138] sm:$0xff]
    %v131 = vld [vmem:[#allocation2 + $0x140] sm:$0xff]
    %v132 = vld [vmem:[#allocation2 + $0x148] sm:$0xff]
    %v133 = vld [vmem:[#allocation2 + $0x150] sm:$0xff]
    %v134 = vld [vmem:[#allocation2 + $0x158] sm:$0xff]
    %v135 = vld [vmem:[#allocation2 + $0x160] sm:$0xff]
    %v136 = vld [vmem:[#allocation2 + $0x168] sm:$0xff]
    %v137 = vld [vmem:[#allocation2 + $0x170] sm:$0xff]
    %v138 = vld [vmem:[#allocation2 + $0x178] sm:$0xff]
    %v139 = vld [vmem:[#allocation2 + $0x180] sm:$0xff]
    %v140 = vld [vmem:[#allocation2 + $0x188] sm:$0xff]
    %v141 = vld [vmem:[#allocation2 + $0x190] sm:$0xff]
    %v142 = vld [vmem:[#allocation2 + $0x198] sm:$0xff]
    %v143 = vld [vmem:[#allocation2 + $0x1a0] sm:$0xff]
    %v144 = vld [vmem:[#allocation2 + $0x1a8] sm:$0xff]
    %v145 = vld [vmem:[#allocation2 + $0x1b0] sm:$0xff]
    %v146 = vld [vmem:[#allocation2 + $0x1b8] sm:$0xff]
    %v147 = vld [vmem:[#allocation2 + $0x1c0] sm:$0xff]
    %v148 = vld [vmem:[#allocation2 + $0x1c8] sm:$0xff]
    %v149 = vld [vmem:[#allocation2 + $0x1d0] sm:$0xff]
    %v150 = vld [vmem:[#allocation2 + $0x1d8] sm:$0xff]
    %v151 = vld [vmem:[#allocation2 + $0x1e0] sm:$0xff]
    %v152 = vld [vmem:[#allocation2 + $0x1e8] sm:$0xff]
    %v153 = vld [vmem:[#allocation2 + $0x1f0] sm:$0xff]
    %v154 = vld [vmem:[#allocation2 + $0x1f8] sm:$0xff]
    %v155 = vld [vmem:[%s0] sm:$0xf]
    %v156 = vld [vmem:[%s0 + $0x4] sm:$0xf]
    %v157 = vld [vmem:[%s0 + $0x8] sm:$0xf]
    %v158 = vld [vmem:[%s0 + $0xc] sm:$0xf]
    %v159 = vld [vmem:[%s0 + $0x10] sm:$0xf]
    %v160 = vld [vmem:[%s0 + $0x14] sm:$0xf]
    %v161 = vld [vmem:[%s0 + $0x18] sm:$0xf]
    %v162 = vld [vmem:[%s0 + $0x1c] sm:$0xf]
    %v163 = vld [vmem:[%s0 + $0x20] sm:$0xf]
    %v164 = vld [vmem:[%s0 + $0x24] sm:$0xf]
    %v165 = vld [vmem:[%s0 + $0x28] sm:$0xf]
    %v166 = vld [vmem:[%s0 + $0x2c] sm:$0xf]
    %v167 = vld [vmem:[%s0 + $0x30] sm:$0xf]
    %v168 = vld [vmem:[%s0 + $0x34] sm:$0xf]
    %v169 = vld [vmem:[%s0 + $0x38] sm:$0xf]
    %v170 = vld [vmem:[%s0 + $0x3c] sm:$0xf]
    %v171 = vld [vmem:[%s0 + $0x40] sm:$0xf]
    %v172 = vld [vmem:[%s0 + $0x44] sm:$0xf]
    %v173 = vld [vmem:[%s0 + $0x48] sm:$0xf]
    %v174 = vld [vmem:[%s0 + $0x4c] sm:$0xf]
    %v175 = vld [vmem:[%s0 + $0x50] sm:$0xf]
    %v176 = vld [vmem:[%s0 + $0x54] sm:$0xf]
    %v177 = vld [vmem:[%s0 + $0x58] sm:$0xf]
    %v178 = vld [vmem:[%s0 + $0x5c] sm:$0xf]
    %v179 = vld [vmem:[%s0 + $0x60] sm:$0xf]
    %v180 = vld [vmem:[%s0 + $0x64] sm:$0xf]
    %v181 = vld [vmem:[%s0 + $0x68] sm:$0xf]
    %v182 = vld [vmem:[%s0 + $0x6c] sm:$0xf]
    %v183 = vld [vmem:[%s0 + $0x70] sm:$0xf]
    %v184 = vld [vmem:[%s0 + $0x74] sm:$0xf]
    %v185 = vld [vmem:[%s0 + $0x78] sm:$0xf]
    %v186 = vld [vmem:[%s0 + $0x7c] sm:$0xf]
    %v187 = vld [vmem:[%s0 + $0x80] sm:$0xf]
    %v188 = vld [vmem:[%s0 + $0x84] sm:$0xf]
    %v189 = vld [vmem:[%s0 + $0x88] sm:$0xf]
    %v190 = vld [vmem:[%s0 + $0x8c] sm:$0xf]
    %v191 = vld [vmem:[%s0 + $0x90] sm:$0xf]
    %v192 = vld [vmem:[%s0 + $0x94] sm:$0xf]
    %v193 = vld [vmem:[%s0 + $0x98] sm:$0xf]
    %v194 = vld [vmem:[%s0 + $0x9c] sm:$0xf]
    %v195 = vld [vmem:[%s0 + $0xa0] sm:$0xf]
    %v196 = vld [vmem:[%s0 + $0xa4] sm:$0xf]
    %v197 = vld [vmem:[%s0 + $0xa8] sm:$0xf]
    %v198 = vld [vmem:[%s0 + $0xac] sm:$0xf]
    %v199 = vld [vmem:[%s0 + $0xb0] sm:$0xf]
    %v200 = vld [vmem:[%s0 + $0xb4] sm:$0xf]
    %v201 = vld [vmem:[%s0 + $0xb8] sm:$0xf]
    %v202 = vld [vmem:[%s0 + $0xbc] sm:$0xf]
    %v203 = vld [vmem:[%s0 + $0xc0] sm:$0xf]
    %v204 = vld [vmem:[%s0 + $0xc4] sm:$0xf]
    %v205 = vld [vmem:[%s0 + $0xc8] sm:$0xf]
    %v206 = vld [vmem:[%s0 + $0xcc] sm:$0xf]
    %v207 = vld [vmem:[%s0 + $0xd0] sm:$0xf]
    %v208 = vld [vmem:[%s0 + $0xd4] sm:$0xf]
    %v209 = vld [vmem:[%s0 + $0xd8] sm:$0xf]
    %v210 = vld [vmem:[%s0 + $0xdc] sm:$0xf]
    %v211 = vld [vmem:[%s0 + $0xe0] sm:$0xf]
    %v212 = vld [vmem:[%s0 + $0xe4] sm:$0xf]
    %v213 = vld [vmem:[%s0 + $0xe8] sm:$0xf]
    %v214 = vld [vmem:[%s0 + $0xec] sm:$0xf]
    %v215 = vld [vmem:[%s0 + $0xf0] sm:$0xf]
    %v216 = vld [vmem:[%s0 + $0xf4] sm:$0xf]
    %v217 = vld [vmem:[%s0 + $0xf8] sm:$0xf]
    %v218 = vld [vmem:[%s0 + $0xfc] sm:$0xf]
    %v219 = vld [vmem:[%s1] sm:$0xf]
    %v220 = vld [vmem:[%s1 + $0x4] sm:$0xf]
    %v221 = vld [vmem:[%s1 + $0x8] sm:$0xf]
    %v222 = vld [vmem:[%s1 + $0xc] sm:$0x3]
    %v287 = vunpack.c.l.b16 %v155
    %v288 = vunpack.c.l.b16 %v156
    %v289 = vunpack.c.l.b16 %v157
    %v290 = vunpack.c.l.b16 %v158
    %v291 = vunpack.c.l.b16 %v159
    %v292 = vunpack.c.l.b16 %v160
    %v293 = vunpack.c.l.b16 %v161
    %v294 = vunpack.c.l.b16 %v162
    %v295 = vunpack.c.l.b16 %v163
    %v296 = vunpack.c.l.b16 %v164
    %v297 = vunpack.c.l.b16 %v165
    %v298 = vunpack.c.l.b16 %v166
    %v299 = vunpack.c.l.b16 %v167
    %v300 = vunpack.c.l.b16 %v168
    %v301 = vunpack.c.l.b16 %v169
    %v302 = vunpack.c.l.b16 %v170
    %v303 = vunpack.c.l.b16 %v171
    %v304 = vunpack.c.l.b16 %v172
    %v305 = vunpack.c.l.b16 %v173
    %v306 = vunpack.c.l.b16 %v174
    %v307 = vunpack.c.l.b16 %v175
    %v308 = vunpack.c.l.b16 %v176
    %v309 = vunpack.c.l.b16 %v177
    %v310 = vunpack.c.l.b16 %v178
    %v311 = vunpack.c.l.b16 %v179
    %v312 = vunpack.c.l.b16 %v180
    %v313 = vunpack.c.l.b16 %v181
    %v314 = vunpack.c.l.b16 %v182
    %v315 = vunpack.c.l.b16 %v183
    %v316 = vunpack.c.l.b16 %v184
    %v317 = vunpack.c.l.b16 %v185
    %v318 = vunpack.c.l.b16 %v186
    %v319 = vunpack.c.l.b16 %v187
    %v320 = vunpack.c.l.b16 %v188
    %v321 = vunpack.c.l.b16 %v189
    %v322 = vunpack.c.l.b16 %v190
    %v323 = vunpack.c.l.b16 %v191
    %v324 = vunpack.c.l.b16 %v192
    %v325 = vunpack.c.l.b16 %v193
    %v326 = vunpack.c.l.b16 %v194
    %v327 = vunpack.c.l.b16 %v195
    %v328 = vunpack.c.l.b16 %v196
    %v329 = vunpack.c.l.b16 %v197
    %v330 = vunpack.c.l.b16 %v198
    %v331 = vunpack.c.l.b16 %v199
    %v332 = vunpack.c.l.b16 %v200
    %v333 = vunpack.c.l.b16 %v201
    %v334 = vunpack.c.l.b16 %v202
    %v335 = vunpack.c.l.b16 %v203
    %v336 = vunpack.c.l.b16 %v204
    %v337 = vunpack.c.l.b16 %v205
    %v338 = vunpack.c.l.b16 %v206
    %v339 = vunpack.c.l.b16 %v207
    %v340 = vunpack.c.l.b16 %v208
    %v341 = vunpack.c.l.b16 %v209
    %v342 = vunpack.c.l.b16 %v210
    %v343 = vunpack.c.l.b16 %v211
    %v344 = vunpack.c.l.b16 %v212
    %v345 = vunpack.c.l.b16 %v213
    %v346 = vunpack.c.l.b16 %v214
    %v347 = vunpack.c.l.b16 %v215
    %v348 = vunpack.c.l.b16 %v216
    %v349 = vunpack.c.l.b16 %v217
    %v350 = vunpack.c.l.b16 %v218
    %v351 = vpack.c.b16 %v288, %v287
    %v352 = vpack.c.b16 %v290, %v289
    %v353 = vpack.c.b16 %v292, %v291
    %v354 = vpack.c.b16 %v294, %v293
    %v355 = vpack.c.b16 %v296, %v295
    %v356 = vpack.c.b16 %v298, %v297
    %v357 = vpack.c.b16 %v300, %v299
    %v358 = vpack.c.b16 %v302, %v301
    %v359 = vpack.c.b16 %v304, %v303
    %v360 = vpack.c.b16 %v306, %v305
    %v361 = vpack.c.b16 %v308, %v307
    %v362 = vpack.c.b16 %v310, %v309
    %v363 = vpack.c.b16 %v312, %v311
    %v364 = vpack.c.b16 %v314, %v313
    %v365 = vpack.c.b16 %v316, %v315
    %v366 = vpack.c.b16 %v318, %v317
    %v367 = vpack.c.b16 %v320, %v319
    %v368 = vpack.c.b16 %v322, %v321
    %v369 = vpack.c.b16 %v324, %v323
    %v370 = vpack.c.b16 %v326, %v325
    %v371 = vpack.c.b16 %v328, %v327
    %v372 = vpack.c.b16 %v330, %v329
    %v373 = vpack.c.b16 %v332, %v331
    %v374 = vpack.c.b16 %v334, %v333
    %v375 = vpack.c.b16 %v336, %v335
    %v376 = vpack.c.b16 %v338, %v337
    %v377 = vpack.c.b16 %v340, %v339
    %v378 = vpack.c.b16 %v342, %v341
    %v379 = vpack.c.b16 %v344, %v343
    %v380 = vpack.c.b16 %v346, %v345
    %v381 = vpack.c.b16 %v348, %v347
    %v382 = vpack.c.b16 %v350, %v349
    %v387 = vunpack.c.l.b16 %v219
    %v388 = vunpack.c.l.b16 %v220
    %v389 = vunpack.c.l.b16 %v221
    %v390 = vunpack.c.l.b16 %v222
    %v391 = vpack.c.b16 %v388, %v387
    %v392 = vpack.c.b16 %v390, %v389
    %vm394 = vcmask 220160
    %v396 = vsel %vm394, %v351, 0
    %v399 = vsel %vm394, %v352, 0
    %v402 = vsel %vm394, %v353, 0
    %v405 = vsel %vm394, %v354, 0
    %v408 = vsel %vm394, %v355, 0
    %v411 = vsel %vm394, %v356, 0
    %v414 = vsel %vm394, %v357, 0
    %v417 = vsel %vm394, %v358, 0
    %v420 = vsel %vm394, %v359, 0
    %v423 = vsel %vm394, %v360, 0
    %v426 = vsel %vm394, %v361, 0
    %v429 = vsel %vm394, %v362, 0
    %v432 = vsel %vm394, %v363, 0
    %v435 = vsel %vm394, %v364, 0
    %v438 = vsel %vm394, %v365, 0
    %v441 = vsel %vm394, %v366, 0
    %v444 = vsel %vm394, %v367, 0
    %v447 = vsel %vm394, %v368, 0
    %v450 = vsel %vm394, %v369, 0
    %v453 = vsel %vm394, %v370, 0
    %v456 = vsel %vm394, %v371, 0
    %v459 = vsel %vm394, %v372, 0
    %v462 = vsel %vm394, %v373, 0
    %v465 = vsel %vm394, %v374, 0
    %v468 = vsel %vm394, %v375, 0
    %v471 = vsel %vm394, %v376, 0
    %v474 = vsel %vm394, %v377, 0
    %v477 = vsel %vm394, %v378, 0
    %v480 = vsel %vm394, %v379, 0
    %v483 = vsel %vm394, %v380, 0
    %v486 = vsel %vm394, %v381, 0
    %v489 = vsel %vm394, %v382, 0
    %vm491 = vcmask 1044480
    %vm492 = vcmask 1045504
    %v493 = vsel %vm491, 4294967295, 65535
    %v494 = vsel %vm492, %v493, 0
    %v496 = vand.u32 %v392, %v494
    %498 = vmatprep.subr.bf16.mxu0 0
    %499 = vmatpush1.bf16.msra.mxu0 0
    %500 = vmatprep.subr.bf16.mxu0 0
    %501 = vmatpush1.bf16.msra.mxu0 0
    %502 = vmatprep.subr.bf16.mxu0 0
    %503 = vmatpush1.bf16.msra.mxu0 0
    %504 = vmatprep.subr.bf16.mxu0 0
    %505 = vmatpush1.bf16.msra.mxu0 0
    %506 = vmatprep.subr.bf16.mxu0 0
    %507 = vmatpush1.bf16.msra.mxu0 0
    %508 = vmatprep.subr.bf16.mxu0 0
    %509 = vmatpush1.bf16.msra.mxu0 0
    %510 = vmatprep.subr.bf16.mxu0 0
    %511 = vmatpush1.bf16.msra.mxu0 %v496
    %512 = vmatprep.subr.bf16.mxu0 0
    %513 = vmatpush1.bf16.msra.mxu0 %v391
    %514 = vmatprep.subr.bf16.mxu0 0
    %515 = vmatpush2.bf16.msra.mxu0 0
    %516 = vmatprep.subr.bf16.mxu0 0
    %517 = vmatpush2.bf16.msra.mxu0 0
    %518 = vmatprep.subr.bf16.mxu0 0
    %519 = vmatpush2.bf16.msra.mxu0 0
    %520 = vmatprep.subr.bf16.mxu0 0
    %521 = vmatpush2.bf16.msra.mxu0 0
    %522 = vmatprep.subr.bf16.mxu0 0
    %523 = vmatpush2.bf16.msra.mxu0 0
    %524 = vmatprep.subr.bf16.mxu0 0
    %525 = vmatpush2.bf16.msra.mxu0 0
    %526 = vmatprep.subr.bf16.mxu0 0
    %527 = vmatpush2.bf16.msra.mxu0 0
    %528 = vmatprep.subr.bf16.mxu0 0
    %529 = vmatpush2.bf16.msra.mxu0 0
    %530 = vmatprep.mubr.bf16.mxu0 0
    %531 = vmatmul.mubr.bf16.gmra.mxu0 %v396
    %v532 = vpop.f32.mrf.mxu0
    %v533 = vadd.f32 0.0, %v532
    %v534 = vpop.f32.mrf.mxu0
    %v535 = vpop.f32.mrf.mxu0
    %v536 = vadd.f32 0.0, %v535
    %v537 = vpop.f32.mrf.mxu0
    %538 = vmatprep.mubr.bf16.mxu0 0
    %539 = vmatmul.mubr.bf16.gmra.mxu0 %v399
    %v540 = vpop.f32.mrf.mxu0
    %v541 = vadd.f32 0.0, %v540
    %v542 = vpop.f32.mrf.mxu0
    %v543 = vpop.f32.mrf.mxu0
    %v544 = vadd.f32 0.0, %v543
    %v545 = vpop.f32.mrf.mxu0
    %546 = vmatprep.mubr.bf16.mxu0 0
    %547 = vmatmul.mubr.bf16.gmra.mxu0 %v402
    %v548 = vpop.f32.mrf.mxu0
    %v549 = vadd.f32 0.0, %v548
    %v550 = vpop.f32.mrf.mxu0
    %v551 = vpop.f32.mrf.mxu0
    %v552 = vadd.f32 0.0, %v551
    %v553 = vpop.f32.mrf.mxu0
    %554 = vmatprep.mubr.bf16.mxu0 0
    %555 = vmatmul.mubr.bf16.gmra.mxu0 %v405
    %v556 = vpop.f32.mrf.mxu0
    %v557 = vadd.f32 0.0, %v556
    %v558 = vpop.f32.mrf.mxu0
    %v559 = vpop.f32.mrf.mxu0
    %v560 = vadd.f32 0.0, %v559
    %v561 = vpop.f32.mrf.mxu0
    %562 = vmatprep.mubr.bf16.mxu0 0
    %563 = vmatmul.mubr.bf16.gmra.mxu0 %v408
    %v564 = vpop.f32.mrf.mxu0
    %v565 = vadd.f32 0.0, %v564
    %v566 = vpop.f32.mrf.mxu0
    %v567 = vpop.f32.mrf.mxu0
    %v568 = vadd.f32 0.0, %v567
    %v569 = vpop.f32.mrf.mxu0
    %570 = vmatprep.mubr.bf16.mxu0 0
    %571 = vmatmul.mubr.bf16.gmra.mxu0 %v411
    %v572 = vpop.f32.mrf.mxu0
    %v573 = vadd.f32 0.0, %v572
    %v574 = vpop.f32.mrf.mxu0
    %v575 = vpop.f32.mrf.mxu0
    %v576 = vadd.f32 0.0, %v575
    %v577 = vpop.f32.mrf.mxu0
    %578 = vmatprep.mubr.bf16.mxu0 0
    %579 = vmatmul.mubr.bf16.gmra.mxu0 %v414
    %v580 = vpop.f32.mrf.mxu0
    %v581 = vadd.f32 0.0, %v580
    %v582 = vpop.f32.mrf.mxu0
    %v583 = vpop.f32.mrf.mxu0
    %v584 = vadd.f32 0.0, %v583
    %v585 = vpop.f32.mrf.mxu0
    %586 = vmatprep.mubr.bf16.mxu0 0
    %587 = vmatmul.mubr.bf16.gmra.mxu0 %v417
    %v588 = vpop.f32.mrf.mxu0
    %v589 = vadd.f32 0.0, %v588
    %v590 = vpop.f32.mrf.mxu0
    %v591 = vpop.f32.mrf.mxu0
    %v592 = vadd.f32 0.0, %v591
    %v593 = vpop.f32.mrf.mxu0
    %594 = vmatprep.mubr.bf16.mxu0 0
    %595 = vmatmul.mubr.bf16.gmra.mxu0 %v420
    %v596 = vpop.f32.mrf.mxu0
    %v597 = vadd.f32 0.0, %v596
    %v598 = vpop.f32.mrf.mxu0
    %v599 = vpop.f32.mrf.mxu0
    %v600 = vadd.f32 0.0, %v599
    %v601 = vpop.f32.mrf.mxu0
    %602 = vmatprep.mubr.bf16.mxu0 0
    %603 = vmatmul.mubr.bf16.gmra.mxu0 %v423
    %v604 = vpop.f32.mrf.mxu0
    %v605 = vadd.f32 0.0, %v604
    %v606 = vpop.f32.mrf.mxu0
    %v607 = vpop.f32.mrf.mxu0
    %v608 = vadd.f32 0.0, %v607
    %v609 = vpop.f32.mrf.mxu0
    %610 = vmatprep.mubr.bf16.mxu0 0
    %611 = vmatmul.mubr.bf16.gmra.mxu0 %v426
    %v612 = vpop.f32.mrf.mxu0
    %v613 = vadd.f32 0.0, %v612
    %v614 = vpop.f32.mrf.mxu0
    %v615 = vpop.f32.mrf.mxu0
    %v616 = vadd.f32 0.0, %v615
    %v617 = vpop.f32.mrf.mxu0
    %618 = vmatprep.mubr.bf16.mxu0 0
    %619 = vmatmul.mubr.bf16.gmra.mxu0 %v429
    %v620 = vpop.f32.mrf.mxu0
    %v621 = vadd.f32 0.0, %v620
    %v622 = vpop.f32.mrf.mxu0
    %v623 = vpop.f32.mrf.mxu0
    %v624 = vadd.f32 0.0, %v623
    %v625 = vpop.f32.mrf.mxu0
    %626 = vmatprep.mubr.bf16.mxu0 0
    %627 = vmatmul.mubr.bf16.gmra.mxu0 %v432
    %v628 = vpop.f32.mrf.mxu0
    %v629 = vadd.f32 0.0, %v628
    %v630 = vpop.f32.mrf.mxu0
    %v631 = vpop.f32.mrf.mxu0
    %v632 = vadd.f32 0.0, %v631
    %v633 = vpop.f32.mrf.mxu0
    %634 = vmatprep.mubr.bf16.mxu0 0
    %635 = vmatmul.mubr.bf16.gmra.mxu0 %v435
    %v636 = vpop.f32.mrf.mxu0
    %v637 = vadd.f32 0.0, %v636
    %v638 = vpop.f32.mrf.mxu0
    %v639 = vpop.f32.mrf.mxu0
    %v640 = vadd.f32 0.0, %v639
    %v641 = vpop.f32.mrf.mxu0
    %642 = vmatprep.mubr.bf16.mxu0 0
    %643 = vmatmul.mubr.bf16.gmra.mxu0 %v438
    %v644 = vpop.f32.mrf.mxu0
    %v645 = vadd.f32 0.0, %v644
    %v646 = vpop.f32.mrf.mxu0
    %v647 = vpop.f32.mrf.mxu0
    %v648 = vadd.f32 0.0, %v647
    %v649 = vpop.f32.mrf.mxu0
    %650 = vmatprep.mubr.bf16.mxu0 0
    %651 = vmatmul.mubr.bf16.gmra.mxu0 %v441
    %v652 = vpop.f32.mrf.mxu0
    %v653 = vadd.f32 0.0, %v652
    %v654 = vpop.f32.mrf.mxu0
    %v655 = vpop.f32.mrf.mxu0
    %v656 = vadd.f32 0.0, %v655
    %v657 = vpop.f32.mrf.mxu0
    %658 = vmatprep.mubr.bf16.mxu0 0
    %659 = vmatmul.mubr.bf16.gmra.mxu0 %v444
    %v660 = vpop.f32.mrf.mxu0
    %v661 = vadd.f32 0.0, %v660
    %v662 = vpop.f32.mrf.mxu0
    %v663 = vpop.f32.mrf.mxu0
    %v664 = vadd.f32 0.0, %v663
    %v665 = vpop.f32.mrf.mxu0
    %666 = vmatprep.mubr.bf16.mxu0 0
    %667 = vmatmul.mubr.bf16.gmra.mxu0 %v447
    %v668 = vpop.f32.mrf.mxu0
    %v669 = vadd.f32 0.0, %v668
    %v670 = vpop.f32.mrf.mxu0
    %v671 = vpop.f32.mrf.mxu0
    %v672 = vadd.f32 0.0, %v671
    %v673 = vpop.f32.mrf.mxu0
    %674 = vmatprep.mubr.bf16.mxu0 0
    %675 = vmatmul.mubr.bf16.gmra.mxu0 %v450
    %v676 = vpop.f32.mrf.mxu0
    %v677 = vadd.f32 0.0, %v676
    %v678 = vpop.f32.mrf.mxu0
    %v679 = vpop.f32.mrf.mxu0
    %v680 = vadd.f32 0.0, %v679
    %v681 = vpop.f32.mrf.mxu0
    %682 = vmatprep.mubr.bf16.mxu0 0
    %683 = vmatmul.mubr.bf16.gmra.mxu0 %v453
    %v684 = vpop.f32.mrf.mxu0
    %v685 = vadd.f32 0.0, %v684
    %v686 = vpop.f32.mrf.mxu0
    %v687 = vpop.f32.mrf.mxu0
    %v688 = vadd.f32 0.0, %v687
    %v689 = vpop.f32.mrf.mxu0
    %690 = vmatprep.mubr.bf16.mxu0 0
    %691 = vmatmul.mubr.bf16.gmra.mxu0 %v456
    %v692 = vpop.f32.mrf.mxu0
    %v693 = vadd.f32 0.0, %v692
    %v694 = vpop.f32.mrf.mxu0
    %v695 = vpop.f32.mrf.mxu0
    %v696 = vadd.f32 0.0, %v695
    %v697 = vpop.f32.mrf.mxu0
    %698 = vmatprep.mubr.bf16.mxu0 0
    %699 = vmatmul.mubr.bf16.gmra.mxu0 %v459
    %v700 = vpop.f32.mrf.mxu0
    %v701 = vadd.f32 0.0, %v700
    %v702 = vpop.f32.mrf.mxu0
    %v703 = vpop.f32.mrf.mxu0
    %v704 = vadd.f32 0.0, %v703
    %v705 = vpop.f32.mrf.mxu0
    %706 = vmatprep.mubr.bf16.mxu0 0
    %707 = vmatmul.mubr.bf16.gmra.mxu0 %v462
    %v708 = vpop.f32.mrf.mxu0
    %v709 = vadd.f32 0.0, %v708
    %v710 = vpop.f32.mrf.mxu0
    %v711 = vpop.f32.mrf.mxu0
    %v712 = vadd.f32 0.0, %v711
    %v713 = vpop.f32.mrf.mxu0
    %714 = vmatprep.mubr.bf16.mxu0 0
    %715 = vmatmul.mubr.bf16.gmra.mxu0 %v465
    %v716 = vpop.f32.mrf.mxu0
    %v717 = vadd.f32 0.0, %v716
    %v718 = vpop.f32.mrf.mxu0
    %v719 = vpop.f32.mrf.mxu0
    %v720 = vadd.f32 0.0, %v719
    %v721 = vpop.f32.mrf.mxu0
    %722 = vmatprep.mubr.bf16.mxu0 0
    %723 = vmatmul.mubr.bf16.gmra.mxu0 %v468
    %v724 = vpop.f32.mrf.mxu0
    %v725 = vadd.f32 0.0, %v724
    %v726 = vpop.f32.mrf.mxu0
    %v727 = vpop.f32.mrf.mxu0
    %v728 = vadd.f32 0.0, %v727
    %v729 = vpop.f32.mrf.mxu0
    %730 = vmatprep.mubr.bf16.mxu0 0
    %731 = vmatmul.mubr.bf16.gmra.mxu0 %v471
    %v732 = vpop.f32.mrf.mxu0
    %v733 = vadd.f32 0.0, %v732
    %v734 = vpop.f32.mrf.mxu0
    %v735 = vpop.f32.mrf.mxu0
    %v736 = vadd.f32 0.0, %v735
    %v737 = vpop.f32.mrf.mxu0
    %738 = vmatprep.mubr.bf16.mxu0 0
    %739 = vmatmul.mubr.bf16.gmra.mxu0 %v474
    %v740 = vpop.f32.mrf.mxu0
    %v741 = vadd.f32 0.0, %v740
    %v742 = vpop.f32.mrf.mxu0
    %v743 = vpop.f32.mrf.mxu0
    %v744 = vadd.f32 0.0, %v743
    %v745 = vpop.f32.mrf.mxu0
    %746 = vmatprep.mubr.bf16.mxu0 0
    %747 = vmatmul.mubr.bf16.gmra.mxu0 %v477
    %v748 = vpop.f32.mrf.mxu0
    %v749 = vadd.f32 0.0, %v748
    %v750 = vpop.f32.mrf.mxu0
    %v751 = vpop.f32.mrf.mxu0
    %v752 = vadd.f32 0.0, %v751
    %v753 = vpop.f32.mrf.mxu0
    %754 = vmatprep.mubr.bf16.mxu0 0
    %755 = vmatmul.mubr.bf16.gmra.mxu0 %v480
    %v756 = vpop.f32.mrf.mxu0
    %v757 = vadd.f32 0.0, %v756
    %v758 = vpop.f32.mrf.mxu0
    %v759 = vpop.f32.mrf.mxu0
    %v760 = vadd.f32 0.0, %v759
    %v761 = vpop.f32.mrf.mxu0
    %762 = vmatprep.mubr.bf16.mxu0 0
    %763 = vmatmul.mubr.bf16.gmra.mxu0 %v483
    %v764 = vpop.f32.mrf.mxu0
    %v765 = vadd.f32 0.0, %v764
    %v766 = vpop.f32.mrf.mxu0
    %v767 = vpop.f32.mrf.mxu0
    %v768 = vadd.f32 0.0, %v767
    %v769 = vpop.f32.mrf.mxu0
    %770 = vmatprep.mubr.bf16.mxu0 0
    %771 = vmatmul.mubr.bf16.gmra.mxu0 %v486
    %v772 = vpop.f32.mrf.mxu0
    %v773 = vadd.f32 0.0, %v772
    %v774 = vpop.f32.mrf.mxu0
    %v775 = vpop.f32.mrf.mxu0
    %v776 = vadd.f32 0.0, %v775
    %v777 = vpop.f32.mrf.mxu0
    %778 = vmatprep.mubr.bf16.mxu0 0
    %779 = vmatmul.mubr.bf16.gmra.mxu0 %v489
    %v780 = vpop.f32.mrf.mxu0
    %v781 = vadd.f32 0.0, %v780
    %v782 = vpop.f32.mrf.mxu0
    %v783 = vpop.f32.mrf.mxu0
    %v784 = vadd.f32 0.0, %v783
    %v785 = vpop.f32.mrf.mxu0
    %786 = vdwg.mxu0
    %v787 = vadd.f32 %v91, %v533
    %v788 = vadd.f32 %v92, %v536
    %v789 = vadd.f32 %v93, %v541
    %v790 = vadd.f32 %v94, %v544
    %v791 = vadd.f32 %v95, %v549
    %v792 = vadd.f32 %v96, %v552
    %v793 = vadd.f32 %v97, %v557
    %v794 = vadd.f32 %v98, %v560
    %v795 = vadd.f32 %v99, %v565
    %v796 = vadd.f32 %v100, %v568
    %v797 = vadd.f32 %v101, %v573
    %v798 = vadd.f32 %v102, %v576
    %v799 = vadd.f32 %v103, %v581
    %v800 = vadd.f32 %v104, %v584
    %v801 = vadd.f32 %v105, %v589
    %v802 = vadd.f32 %v106, %v592
    %v803 = vadd.f32 %v107, %v597
    %v804 = vadd.f32 %v108, %v600
    %v805 = vadd.f32 %v109, %v605
    %v806 = vadd.f32 %v110, %v608
    %v807 = vadd.f32 %v111, %v613
    %v808 = vadd.f32 %v112, %v616
    %v809 = vadd.f32 %v113, %v621
    %v810 = vadd.f32 %v114, %v624
    %v811 = vadd.f32 %v115, %v629
    %v812 = vadd.f32 %v116, %v632
    %v813 = vadd.f32 %v117, %v637
    %v814 = vadd.f32 %v118, %v640
    %v815 = vadd.f32 %v119, %v645
    %v816 = vadd.f32 %v120, %v648
    %v817 = vadd.f32 %v121, %v653
    %v818 = vadd.f32 %v122, %v656
    %v819 = vadd.f32 %v123, %v661
    %v820 = vadd.f32 %v124, %v664
    %v821 = vadd.f32 %v125, %v669
    %v822 = vadd.f32 %v126, %v672
    %v823 = vadd.f32 %v127, %v677
    %v824 = vadd.f32 %v128, %v680
    %v825 = vadd.f32 %v129, %v685
    %v826 = vadd.f32 %v130, %v688
    %v827 = vadd.f32 %v131, %v693
    %v828 = vadd.f32 %v132, %v696
    %v829 = vadd.f32 %v133, %v701
    %v830 = vadd.f32 %v134, %v704
    %v831 = vadd.f32 %v135, %v709
    %v832 = vadd.f32 %v136, %v712
    %v833 = vadd.f32 %v137, %v717
    %v834 = vadd.f32 %v138, %v720
    %v835 = vadd.f32 %v139, %v725
    %v836 = vadd.f32 %v140, %v728
    %v837 = vadd.f32 %v141, %v733
    %v838 = vadd.f32 %v142, %v736
    %v839 = vadd.f32 %v143, %v741
    %v840 = vadd.f32 %v144, %v744
    %v841 = vadd.f32 %v145, %v749
    %v842 = vadd.f32 %v146, %v752
    %v843 = vadd.f32 %v147, %v757
    %v844 = vadd.f32 %v148, %v760
    %v845 = vadd.f32 %v149, %v765
    %v846 = vadd.f32 %v150, %v768
    %v847 = vadd.f32 %v151, %v773
    %v848 = vadd.f32 %v152, %v776
    %v849 = vadd.f32 %v153, %v781
    %v850 = vadd.f32 %v154, %v784
    %vm851 = vcmask 523264
    %852 = vst.msk [vmem:[#allocation2] sm:$0xff] %vm851, %v787
    %853 = vst.msk [vmem:[#allocation2 + $0x8] sm:$0xff] %vm851, %v788
    %854 = vst.msk [vmem:[#allocation2 + $0x10] sm:$0xff] %vm851, %v789
    %855 = vst.msk [vmem:[#allocation2 + $0x18] sm:$0xff] %vm851, %v790
    %856 = vst.msk [vmem:[#allocation2 + $0x20] sm:$0xff] %vm851, %v791
    %857 = vst.msk [vmem:[#allocation2 + $0x28] sm:$0xff] %vm851, %v792
    %858 = vst.msk [vmem:[#allocation2 + $0x30] sm:$0xff] %vm851, %v793
    %859 = vst.msk [vmem:[#allocation2 + $0x38] sm:$0xff] %vm851, %v794
    %860 = vst.msk [vmem:[#allocation2 + $0x40] sm:$0xff] %vm851, %v795
    %861 = vst.msk [vmem:[#allocation2 + $0x48] sm:$0xff] %vm851, %v796
    %862 = vst.msk [vmem:[#allocation2 + $0x50] sm:$0xff] %vm851, %v797
    %863 = vst.msk [vmem:[#allocation2 + $0x58] sm:$0xff] %vm851, %v798
    %864 = vst.msk [vmem:[#allocation2 + $0x60] sm:$0xff] %vm851, %v799
    %865 = vst.msk [vmem:[#allocation2 + $0x68] sm:$0xff] %vm851, %v800
    %866 = vst.msk [vmem:[#allocation2 + $0x70] sm:$0xff] %vm851, %v801
    %867 = vst.msk [vmem:[#allocation2 + $0x78] sm:$0xff] %vm851, %v802
    %868 = vst.msk [vmem:[#allocation2 + $0x80] sm:$0xff] %vm851, %v803
    %869 = vst.msk [vmem:[#allocation2 + $0x88] sm:$0xff] %vm851, %v804
    %870 = vst.msk [vmem:[#allocation2 + $0x90] sm:$0xff] %vm851, %v805
    %871 = vst.msk [vmem:[#allocation2 + $0x98] sm:$0xff] %vm851, %v806
    %872 = vst.msk [vmem:[#allocation2 + $0xa0] sm:$0xff] %vm851, %v807
    %873 = vst.msk [vmem:[#allocation2 + $0xa8] sm:$0xff] %vm851, %v808
    %874 = vst.msk [vmem:[#allocation2 + $0xb0] sm:$0xff] %vm851, %v809
    %875 = vst.msk [vmem:[#allocation2 + $0xb8] sm:$0xff] %vm851, %v810
    %876 = vst.msk [vmem:[#allocation2 + $0xc0] sm:$0xff] %vm851, %v811
    %877 = vst.msk [vmem:[#allocation2 + $0xc8] sm:$0xff] %vm851, %v812
    %878 = vst.msk [vmem:[#allocation2 + $0xd0] sm:$0xff] %vm851, %v813
    %879 = vst.msk [vmem:[#allocation2 + $0xd8] sm:$0xff] %vm851, %v814
    %880 = vst.msk [vmem:[#allocation2 + $0xe0] sm:$0xff] %vm851, %v815
    %881 = vst.msk [vmem:[#allocation2 + $0xe8] sm:$0xff] %vm851, %v816
    %882 = vst.msk [vmem:[#allocation2 + $0xf0] sm:$0xff] %vm851, %v817
    %883 = vst.msk [vmem:[#allocation2 + $0xf8] sm:$0xff] %vm851, %v818
    %884 = vst.msk [vmem:[#allocation2 + $0x100] sm:$0xff] %vm851, %v819
    %885 = vst.msk [vmem:[#allocation2 + $0x108] sm:$0xff] %vm851, %v820
    %886 = vst.msk [vmem:[#allocation2 + $0x110] sm:$0xff] %vm851, %v821
    %887 = vst.msk [vmem:[#allocation2 + $0x118] sm:$0xff] %vm851, %v822
    %888 = vst.msk [vmem:[#allocation2 + $0x120] sm:$0xff] %vm851, %v823
    %889 = vst.msk [vmem:[#allocation2 + $0x128] sm:$0xff] %vm851, %v824
    %890 = vst.msk [vmem:[#allocation2 + $0x130] sm:$0xff] %vm851, %v825
    %891 = vst.msk [vmem:[#allocation2 + $0x138] sm:$0xff] %vm851, %v826
    %892 = vst.msk [vmem:[#allocation2 + $0x140] sm:$0xff] %vm851, %v827
    %893 = vst.msk [vmem:[#allocation2 + $0x148] sm:$0xff] %vm851, %v828
    %894 = vst.msk [vmem:[#allocation2 + $0x150] sm:$0xff] %vm851, %v829
    %895 = vst.msk [vmem:[#allocation2 + $0x158] sm:$0xff] %vm851, %v830
    %896 = vst.msk [vmem:[#allocation2 + $0x160] sm:$0xff] %vm851, %v831
    %897 = vst.msk [vmem:[#allocation2 + $0x168] sm:$0xff] %vm851, %v832
    %898 = vst.msk [vmem:[#allocation2 + $0x170] sm:$0xff] %vm851, %v833
    %899 = vst.msk [vmem:[#allocation2 + $0x178] sm:$0xff] %vm851, %v834
    %900 = vst.msk [vmem:[#allocation2 + $0x180] sm:$0xff] %vm851, %v835
    %901 = vst.msk [vmem:[#allocation2 + $0x188] sm:$0xff] %vm851, %v836
    %902 = vst.msk [vmem:[#allocation2 + $0x190] sm:$0xff] %vm851, %v837
    %903 = vst.msk [vmem:[#allocation2 + $0x198] sm:$0xff] %vm851, %v838
    %904 = vst.msk [vmem:[#allocation2 + $0x1a0] sm:$0xff] %vm851, %v839
    %905 = vst.msk [vmem:[#allocation2 + $0x1a8] sm:$0xff] %vm851, %v840
    %906 = vst.msk [vmem:[#allocation2 + $0x1b0] sm:$0xff] %vm851, %v841
    %907 = vst.msk [vmem:[#allocation2 + $0x1b8] sm:$0xff] %vm851, %v842
    %908 = vst.msk [vmem:[#allocation2 + $0x1c0] sm:$0xff] %vm851, %v843
    %909 = vst.msk [vmem:[#allocation2 + $0x1c8] sm:$0xff] %vm851, %v844
    %910 = vst.msk [vmem:[#allocation2 + $0x1d0] sm:$0xff] %vm851, %v845
    %911 = vst.msk [vmem:[#allocation2 + $0x1d8] sm:$0xff] %vm851, %v846
    %912 = vst.msk [vmem:[#allocation2 + $0x1e0] sm:$0xff] %vm851, %v847
    %913 = vst.msk [vmem:[#allocation2 + $0x1e8] sm:$0xff] %vm851, %v848
    %914 = vst.msk [vmem:[#allocation2 + $0x1f0] sm:$0xff] %vm851, %v849
    %915 = vst.msk [vmem:[#allocation2 + $0x1f8] sm:$0xff] %vm851, %v850
    // Predicated region
    $region26: #{conv3x3.1} parent=1 // pred_check
      %p916 = pneg %p22
    $region27: #{conv3x3.1} parent=1 // pred_check_branch
      %918 = sbr.rel (%p916) target = $region29
    $region28: #{conv3x3.1} parent=1 // pred_region
      %v919 = vld [vmem:[#allocation2] sm:$0xff]
      %v920 = vld [vmem:[#allocation2 + $0x8] sm:$0xff]
      %v921 = vld [vmem:[#allocation2 + $0x10] sm:$0xff]
      %v922 = vld [vmem:[#allocation2 + $0x18] sm:$0xff]
      %v923 = vld [vmem:[#allocation2 + $0x20] sm:$0xff]
      %v924 = vld [vmem:[#allocation2 + $0x28] sm:$0xff]
      %v925 = vld [vmem:[#allocation2 + $0x30] sm:$0xff]
      %v926 = vld [vmem:[#allocation2 + $0x38] sm:$0xff]
      %v927 = vld [vmem:[#allocation2 + $0x40] sm:$0xff]
      %v928 = vld [vmem:[#allocation2 + $0x48] sm:$0xff]
      %v929 = vld [vmem:[#allocation2 + $0x50] sm:$0xff]
      %v930 = vld [vmem:[#allocation2 + $0x58] sm:$0xff]
      %v931 = vld [vmem:[#allocation2 + $0x60] sm:$0xff]
      %v932 = vld [vmem:[#allocation2 + $0x68] sm:$0xff]
      %v933 = vld [vmem:[#allocation2 + $0x70] sm:$0xff]
      %v934 = vld [vmem:[#allocation2 + $0x78] sm:$0xff]
      %v935 = vld [vmem:[#allocation2 + $0x80] sm:$0xff]
      %v936 = vld [vmem:[#allocation2 + $0x88] sm:$0xff]
      %v937 = vld [vmem:[#allocation2 + $0x90] sm:$0xff]
      %v938 = vld [vmem:[#allocation2 + $0x98] sm:$0xff]
      %v939 = vld [vmem:[#allocation2 + $0xa0] sm:$0xff]
      %v940 = vld [vmem:[#allocation2 + $0xa8] sm:$0xff]
      %v941 = vld [vmem:[#allocation2 + $0xb0] sm:$0xff]
      %v942 = vld [vmem:[#allocation2 + $0xb8] sm:$0xff]
      %v943 = vld [vmem:[#allocation2 + $0xc0] sm:$0xff]
      %v944 = vld [vmem:[#allocation2 + $0xc8] sm:$0xff]
      %v945 = vld [vmem:[#allocation2 + $0xd0] sm:$0xff]
      %v946 = vld [vmem:[#allocation2 + $0xd8] sm:$0xff]
      %v947 = vld [vmem:[#allocation2 + $0xe0] sm:$0xff]
      %v948 = vld [vmem:[#allocation2 + $0xe8] sm:$0xff]
      %v949 = vld [vmem:[#allocation2 + $0xf0] sm:$0xff]
      %v950 = vld [vmem:[#allocation2 + $0xf8] sm:$0xff]
      %v951 = vld [vmem:[#allocation2 + $0x100] sm:$0xff]
      %v952 = vld [vmem:[#allocation2 + $0x108] sm:$0xff]
      %v953 = vld [vmem:[#allocation2 + $0x110] sm:$0xff]
      %v954 = vld [vmem:[#allocation2 + $0x118] sm:$0xff]
      %v955 = vld [vmem:[#allocation2 + $0x120] sm:$0xff]
      %v956 = vld [vmem:[#allocation2 + $0x128] sm:$0xff]
      %v957 = vld [vmem:[#allocation2 + $0x130] sm:$0xff]
      %v958 = vld [vmem:[#allocation2 + $0x138] sm:$0xff]
      %v959 = vld [vmem:[#allocation2 + $0x140] sm:$0xff]
      %v960 = vld [vmem:[#allocation2 + $0x148] sm:$0xff]
      %v961 = vld [vmem:[#allocation2 + $0x150] sm:$0xff]
      %v962 = vld [vmem:[#allocation2 + $0x158] sm:$0xff]
      %v963 = vld [vmem:[#allocation2 + $0x160] sm:$0xff]
      %v964 = vld [vmem:[#allocation2 + $0x168] sm:$0xff]
      %v965 = vld [vmem:[#allocation2 + $0x170] sm:$0xff]
      %v966 = vld [vmem:[#allocation2 + $0x178] sm:$0xff]
      %v967 = vld [vmem:[#allocation2 + $0x180] sm:$0xff]
      %v968 = vld [vmem:[#allocation2 + $0x188] sm:$0xff]
      %v969 = vld [vmem:[#allocation2 + $0x190] sm:$0xff]
      %v970 = vld [vmem:[#allocation2 + $0x198] sm:$0xff]
      %v971 = vld [vmem:[#allocation2 + $0x1a0] sm:$0xff]
      %v972 = vld [vmem:[#allocation2 + $0x1a8] sm:$0xff]
      %v973 = vld [vmem:[#allocation2 + $0x1b0] sm:$0xff]
      %v974 = vld [vmem:[#allocation2 + $0x1b8] sm:$0xff]
      %v975 = vld [vmem:[#allocation2 + $0x1c0] sm:$0xff]
      %v976 = vld [vmem:[#allocation2 + $0x1c8] sm:$0xff]
      %v977 = vld [vmem:[#allocation2 + $0x1d0] sm:$0xff]
      %v978 = vld [vmem:[#allocation2 + $0x1d8] sm:$0xff]
      %v979 = vld [vmem:[#allocation2 + $0x1e0] sm:$0xff]
      %v980 = vld [vmem:[#allocation2 + $0x1e8] sm:$0xff]
      %v981 = vld [vmem:[#allocation2 + $0x1f0] sm:$0xff]
      %v982 = vld [vmem:[#allocation2 + $0x1f8] sm:$0xff]
      %v983 = vld [vmem:[%s2] sm:$0x1]
      %v985 = vlaneseq
      %v986 = vshrl.u32 %v985, 7
      %v987 = vsub.s32 0, %v986
      %v988 = vrot.slane %v983, %v987
      %v990 = vmul.f32 %v919, %v988
      %v991 = vmul.f32 %v920, %v988
      %v992 = vmul.f32 %v921, %v988
      %v993 = vmul.f32 %v922, %v988
      %v994 = vmul.f32 %v923, %v988
      %v995 = vmul.f32 %v924, %v988
      %v996 = vmul.f32 %v925, %v988
      %v997 = vmul.f32 %v926, %v988
      %v998 = vmul.f32 %v927, %v988
      %v999 = vmul.f32 %v928, %v988
      %v1000 = vmul.f32 %v929, %v988
      %v1001 = vmul.f32 %v930, %v988
      %v1002 = vmul.f32 %v931, %v988
      %v1003 = vmul.f32 %v932, %v988
      %v1004 = vmul.f32 %v933, %v988
      %v1005 = vmul.f32 %v934, %v988
      %v1006 = vmul.f32 %v935, %v988
      %v1007 = vmul.f32 %v936, %v988
      %v1008 = vmul.f32 %v937, %v988
      %v1009 = vmul.f32 %v938, %v988
      %v1010 = vmul.f32 %v939, %v988
      %v1011 = vmul.f32 %v940, %v988
      %v1012 = vmul.f32 %v941, %v988
      %v1013 = vmul.f32 %v942, %v988
      %v1014 = vmul.f32 %v943, %v988
      %v1015 = vmul.f32 %v944, %v988
      %v1016 = vmul.f32 %v945, %v988
      %v1017 = vmul.f32 %v946, %v988
      %v1018 = vmul.f32 %v947, %v988
      %v1019 = vmul.f32 %v948, %v988
      %v1020 = vmul.f32 %v949, %v988
      %v1021 = vmul.f32 %v950, %v988
      %v1022 = vmul.f32 %v951, %v988
      %v1023 = vmul.f32 %v952, %v988
      %v1024 = vmul.f32 %v953, %v988
      %v1025 = vmul.f32 %v954, %v988
      %v1026 = vmul.f32 %v955, %v988
      %v1027 = vmul.f32 %v956, %v988
      %v1028 = vmul.f32 %v957, %v988
      %v1029 = vmul.f32 %v958, %v988
      %v1030 = vmul.f32 %v959, %v988
      %v1031 = vmul.f32 %v960, %v988
      %v1032 = vmul.f32 %v961, %v988
      %v1033 = vmul.f32 %v962, %v988
      %v1034 = vmul.f32 %v963, %v988
      %v1035 = vmul.f32 %v964, %v988
      %v1036 = vmul.f32 %v965, %v988
      %v1037 = vmul.f32 %v966, %v988
      %v1038 = vmul.f32 %v967, %v988
      %v1039 = vmul.f32 %v968, %v988
      %v1040 = vmul.f32 %v969, %v988
      %v1041 = vmul.f32 %v970, %v988
      %v1042 = vmul.f32 %v971, %v988
      %v1043 = vmul.f32 %v972, %v988
      %v1044 = vmul.f32 %v973, %v988
      %v1045 = vmul.f32 %v974, %v988
      %v1046 = vmul.f32 %v975, %v988
      %v1047 = vmul.f32 %v976, %v988
      %v1048 = vmul.f32 %v977, %v988
      %v1049 = vmul.f32 %v978, %v988
      %v1050 = vmul.f32 %v979, %v988
      %v1051 = vmul.f32 %v980, %v988
      %v1052 = vmul.f32 %v981, %v988
      %v1053 = vmul.f32 %v982, %v988
      %v1054 = vld [vmem:[%s3] sm:$0x1]
      %v1056 = vlaneseq
      %v1057 = vshrl.u32 %v1056, 7
      %v1058 = vsub.s32 0, %v1057
      %v1059 = vrot.slane %v1054, %v1058
      %v1061 = vadd.f32 %v990, %v1059
      %v1062 = vadd.f32 %v991, %v1059
      %v1063 = vadd.f32 %v992, %v1059
      %v1064 = vadd.f32 %v993, %v1059
      %v1065 = vadd.f32 %v994, %v1059
      %v1066 = vadd.f32 %v995, %v1059
      %v1067 = vadd.f32 %v996, %v1059
      %v1068 = vadd.f32 %v997, %v1059
      %v1069 = vadd.f32 %v998, %v1059
      %v1070 = vadd.f32 %v999, %v1059
      %v1071 = vadd.f32 %v1000, %v1059
      %v1072 = vadd.f32 %v1001, %v1059
      %v1073 = vadd.f32 %v1002, %v1059
      %v1074 = vadd.f32 %v1003, %v1059
      %v1075 = vadd.f32 %v1004, %v1059
      %v1076 = vadd.f32 %v1005, %v1059
      %v1077 = vadd.f32 %v1006, %v1059
      %v1078 = vadd.f32 %v1007, %v1059
      %v1079 = vadd.f32 %v1008, %v1059
      %v1080 = vadd.f32 %v1009, %v1059
      %v1081 = vadd.f32 %v1010, %v1059
      %v1082 = vadd.f32 %v1011, %v1059
      %v1083 = vadd.f32 %v1012, %v1059
      %v1084 = vadd.f32 %v1013, %v1059
      %v1085 = vadd.f32 %v1014, %v1059
      %v1086 = vadd.f32 %v1015, %v1059
      %v1087 = vadd.f32 %v1016, %v1059
      %v1088 = vadd.f32 %v1017, %v1059
      %v1089 = vadd.f32 %v1018, %v1059
      %v1090 = vadd.f32 %v1019, %v1059
      %v1091 = vadd.f32 %v1020, %v1059
      %v1092 = vadd.f32 %v1021, %v1059
      %v1093 = vadd.f32 %v1022, %v1059
      %v1094 = vadd.f32 %v1023, %v1059
      %v1095 = vadd.f32 %v1024, %v1059
      %v1096 = vadd.f32 %v1025, %v1059
      %v1097 = vadd.f32 %v1026, %v1059
      %v1098 = vadd.f32 %v1027, %v1059
      %v1099 = vadd.f32 %v1028, %v1059
      %v1100 = vadd.f32 %v1029, %v1059
      %v1101 = vadd.f32 %v1030, %v1059
      %v1102 = vadd.f32 %v1031, %v1059
      %v1103 = vadd.f32 %v1032, %v1059
      %v1104 = vadd.f32 %v1033, %v1059
      %v1105 = vadd.f32 %v1034, %v1059
      %v1106 = vadd.f32 %v1035, %v1059
      %v1107 = vadd.f32 %v1036, %v1059
      %v1108 = vadd.f32 %v1037, %v1059
      %v1109 = vadd.f32 %v1038, %v1059
      %v1110 = vadd.f32 %v1039, %v1059
      %v1111 = vadd.f32 %v1040, %v1059
      %v1112 = vadd.f32 %v1041, %v1059
      %v1113 = vadd.f32 %v1042, %v1059
      %v1114 = vadd.f32 %v1043, %v1059
      %v1115 = vadd.f32 %v1044, %v1059
      %v1116 = vadd.f32 %v1045, %v1059
      %v1117 = vadd.f32 %v1046, %v1059
      %v1118 = vadd.f32 %v1047, %v1059
      %v1119 = vadd.f32 %v1048, %v1059
      %v1120 = vadd.f32 %v1049, %v1059
      %v1121 = vadd.f32 %v1050, %v1059
      %v1122 = vadd.f32 %v1051, %v1059
      %v1123 = vadd.f32 %v1052, %v1059
      %v1124 = vadd.f32 %v1053, %v1059
      %vm1125 = vcmp.ge.f32.partialorder %v1061, 0.0
      %vm1126 = vcmp.ge.f32.partialorder %v1062, 0.0
      %vm1127 = vcmp.ge.f32.partialorder %v1063, 0.0
      %vm1128 = vcmp.ge.f32.partialorder %v1064, 0.0
      %vm1129 = vcmp.ge.f32.partialorder %v1065, 0.0
      %vm1130 = vcmp.ge.f32.partialorder %v1066, 0.0
      %vm1131 = vcmp.ge.f32.partialorder %v1067, 0.0
      %vm1132 = vcmp.ge.f32.partialorder %v1068, 0.0
      %vm1133 = vcmp.ge.f32.partialorder %v1069, 0.0
      %vm1134 = vcmp.ge.f32.partialorder %v1070, 0.0
      %vm1135 = vcmp.ge.f32.partialorder %v1071, 0.0
      %vm1136 = vcmp.ge.f32.partialorder %v1072, 0.0
      %vm1137 = vcmp.ge.f32.partialorder %v1073, 0.0
      %vm1138 = vcmp.ge.f32.partialorder %v1074, 0.0
      %vm1139 = vcmp.ge.f32.partialorder %v1075, 0.0
      %vm1140 = vcmp.ge.f32.partialorder %v1076, 0.0
      %vm1141 = vcmp.ge.f32.partialorder %v1077, 0.0
      %vm1142 = vcmp.ge.f32.partialorder %v1078, 0.0
      %vm1143 = vcmp.ge.f32.partialorder %v1079, 0.0
      %vm1144 = vcmp.ge.f32.partialorder %v1080, 0.0
      %vm1145 = vcmp.ge.f32.partialorder %v1081, 0.0
      %vm1146 = vcmp.ge.f32.partialorder %v1082, 0.0
      %vm1147 = vcmp.ge.f32.partialorder %v1083, 0.0
      %vm1148 = vcmp.ge.f32.partialorder %v1084, 0.0
      %vm1149 = vcmp.ge.f32.partialorder %v1085, 0.0
      %vm1150 = vcmp.ge.f32.partialorder %v1086, 0.0
      %vm1151 = vcmp.ge.f32.partialorder %v1087, 0.0
      %vm1152 = vcmp.ge.f32.partialorder %v1088, 0.0
      %vm1153 = vcmp.ge.f32.partialorder %v1089, 0.0
      %vm1154 = vcmp.ge.f32.partialorder %v1090, 0.0
      %vm1155 = vcmp.ge.f32.partialorder %v1091, 0.0
      %vm1156 = vcmp.ge.f32.partialorder %v1092, 0.0
      %vm1157 = vcmp.ge.f32.partialorder %v1093, 0.0
      %vm1158 = vcmp.ge.f32.partialorder %v1094, 0.0
      %vm1159 = vcmp.ge.f32.partialorder %v1095, 0.0
      %vm1160 = vcmp.ge.f32.partialorder %v1096, 0.0
      %vm1161 = vcmp.ge.f32.partialorder %v1097, 0.0
      %vm1162 = vcmp.ge.f32.partialorder %v1098, 0.0
      %vm1163 = vcmp.ge.f32.partialorder %v1099, 0.0
      %vm1164 = vcmp.ge.f32.partialorder %v1100, 0.0
      %vm1165 = vcmp.ge.f32.partialorder %v1101, 0.0
      %vm1166 = vcmp.ge.f32.partialorder %v1102, 0.0
      %vm1167 = vcmp.ge.f32.partialorder %v1103, 0.0
      %vm1168 = vcmp.ge.f32.partialorder %v1104, 0.0
      %vm1169 = vcmp.ge.f32.partialorder %v1105, 0.0
      %vm1170 = vcmp.ge.f32.partialorder %v1106, 0.0
      %vm1171 = vcmp.ge.f32.partialorder %v1107, 0.0
      %vm1172 = vcmp.ge.f32.partialorder %v1108, 0.0
      %vm1173 = vcmp.ge.f32.partialorder %v1109, 0.0
      %vm1174 = vcmp.ge.f32.partialorder %v1110, 0.0
      %vm1175 = vcmp.ge.f32.partialorder %v1111, 0.0
      %vm1176 = vcmp.ge.f32.partialorder %v1112, 0.0
      %vm1177 = vcmp.ge.f32.partialorder %v1113, 0.0
      %vm1178 = vcmp.ge.f32.partialorder %v1114, 0.0
      %vm1179 = vcmp.ge.f32.partialorder %v1115, 0.0
      %vm1180 = vcmp.ge.f32.partialorder %v1116, 0.0
      %vm1181 = vcmp.ge.f32.partialorder %v1117, 0.0
      %vm1182 = vcmp.ge.f32.partialorder %v1118, 0.0
      %vm1183 = vcmp.ge.f32.partialorder %v1119, 0.0
      %vm1184 = vcmp.ge.f32.partialorder %v1120, 0.0
      %vm1185 = vcmp.ge.f32.partialorder %v1121, 0.0
      %vm1186 = vcmp.ge.f32.partialorder %v1122, 0.0
      %vm1187 = vcmp.ge.f32.partialorder %v1123, 0.0
      %vm1188 = vcmp.ge.f32.partialorder %v1124, 0.0
      %v1189 = vld [vmem:[%s4] sm:$0x1]
      %v1191 = vlaneseq
      %v1192 = vshrl.u32 %v1191, 7
      %v1193 = vsub.s32 0, %v1192
      %v1194 = vrot.slane %v1189, %v1193
      %v1196 = vmul.f32 %v1061, %v1194
      %v1197 = vmul.f32 %v1062, %v1194
      %v1198 = vmul.f32 %v1063, %v1194
      %v1199 = vmul.f32 %v1064, %v1194
      %v1200 = vmul.f32 %v1065, %v1194
      %v1201 = vmul.f32 %v1066, %v1194
      %v1202 = vmul.f32 %v1067, %v1194
      %v1203 = vmul.f32 %v1068, %v1194
      %v1204 = vmul.f32 %v1069, %v1194
      %v1205 = vmul.f32 %v1070, %v1194
      %v1206 = vmul.f32 %v1071, %v1194
      %v1207 = vmul.f32 %v1072, %v1194
      %v1208 = vmul.f32 %v1073, %v1194
      %v1209 = vmul.f32 %v1074, %v1194
      %v1210 = vmul.f32 %v1075, %v1194
      %v1211 = vmul.f32 %v1076, %v1194
      %v1212 = vmul.f32 %v1077, %v1194
      %v1213 = vmul.f32 %v1078, %v1194
      %v1214 = vmul.f32 %v1079, %v1194
      %v1215 = vmul.f32 %v1080, %v1194
      %v1216 = vmul.f32 %v1081, %v1194
      %v1217 = vmul.f32 %v1082, %v1194
      %v1218 = vmul.f32 %v1083, %v1194
      %v1219 = vmul.f32 %v1084, %v1194
      %v1220 = vmul.f32 %v1085, %v1194
      %v1221 = vmul.f32 %v1086, %v1194
      %v1222 = vmul.f32 %v1087, %v1194
      %v1223 = vmul.f32 %v1088, %v1194
      %v1224 = vmul.f32 %v1089, %v1194
      %v1225 = vmul.f32 %v1090, %v1194
      %v1226 = vmul.f32 %v1091, %v1194
      %v1227 = vmul.f32 %v1092, %v1194
      %v1228 = vmul.f32 %v1093, %v1194
      %v1229 = vmul.f32 %v1094, %v1194
      %v1230 = vmul.f32 %v1095, %v1194
      %v1231 = vmul.f32 %v1096, %v1194
      %v1232 = vmul.f32 %v1097, %v1194
      %v1233 = vmul.f32 %v1098, %v1194
      %v1234 = vmul.f32 %v1099, %v1194
      %v1235 = vmul.f32 %v1100, %v1194
      %v1236 = vmul.f32 %v1101, %v1194
      %v1237 = vmul.f32 %v1102, %v1194
      %v1238 = vmul.f32 %v1103, %v1194
      %v1239 = vmul.f32 %v1104, %v1194
      %v1240 = vmul.f32 %v1105, %v1194
      %v1241 = vmul.f32 %v1106, %v1194
      %v1242 = vmul.f32 %v1107, %v1194
      %v1243 = vmul.f32 %v1108, %v1194
      %v1244 = vmul.f32 %v1109, %v1194
      %v1245 = vmul.f32 %v1110, %v1194
      %v1246 = vmul.f32 %v1111, %v1194
      %v1247 = vmul.f32 %v1112, %v1194
      %v1248 = vmul.f32 %v1113, %v1194
      %v1249 = vmul.f32 %v1114, %v1194
      %v1250 = vmul.f32 %v1115, %v1194
      %v1251 = vmul.f32 %v1116, %v1194
      %v1252 = vmul.f32 %v1117, %v1194
      %v1253 = vmul.f32 %v1118, %v1194
      %v1254 = vmul.f32 %v1119, %v1194
      %v1255 = vmul.f32 %v1120, %v1194
      %v1256 = vmul.f32 %v1121, %v1194
      %v1257 = vmul.f32 %v1122, %v1194
      %v1258 = vmul.f32 %v1123, %v1194
      %v1259 = vmul.f32 %v1124, %v1194
      %v1260 = vsel %vm1125, %v1061, %v1196
      %v1261 = vsel %vm1126, %v1062, %v1197
      %v1262 = vsel %vm1127, %v1063, %v1198
      %v1263 = vsel %vm1128, %v1064, %v1199
      %v1264 = vsel %vm1129, %v1065, %v1200
      %v1265 = vsel %vm1130, %v1066, %v1201
      %v1266 = vsel %vm1131, %v1067, %v1202
      %v1267 = vsel %vm1132, %v1068, %v1203
      %v1268 = vsel %vm1133, %v1069, %v1204
      %v1269 = vsel %vm1134, %v1070, %v1205
      %v1270 = vsel %vm1135, %v1071, %v1206
      %v1271 = vsel %vm1136, %v1072, %v1207
      %v1272 = vsel %vm1137, %v1073, %v1208
      %v1273 = vsel %vm1138, %v1074, %v1209
      %v1274 = vsel %vm1139, %v1075, %v1210
      %v1275 = vsel %vm1140, %v1076, %v1211
      %v1276 = vsel %vm1141, %v1077, %v1212
      %v1277 = vsel %vm1142, %v1078, %v1213
      %v1278 = vsel %vm1143, %v1079, %v1214
      %v1279 = vsel %vm1144, %v1080, %v1215
      %v1280 = vsel %vm1145, %v1081, %v1216
      %v1281 = vsel %vm1146, %v1082, %v1217
      %v1282 = vsel %vm1147, %v1083, %v1218
      %v1283 = vsel %vm1148, %v1084, %v1219
      %v1284 = vsel %vm1149, %v1085, %v1220
      %v1285 = vsel %vm1150, %v1086, %v1221
      %v1286 = vsel %vm1151, %v1087, %v1222
      %v1287 = vsel %vm1152, %v1088, %v1223
      %v1288 = vsel %vm1153, %v1089, %v1224
      %v1289 = vsel %vm1154, %v1090, %v1225
      %v1290 = vsel %vm1155, %v1091, %v1226
      %v1291 = vsel %vm1156, %v1092, %v1227
      %v1292 = vsel %vm1157, %v1093, %v1228
      %v1293 = vsel %vm1158, %v1094, %v1229
      %v1294 = vsel %vm1159, %v1095, %v1230
      %v1295 = vsel %vm1160, %v1096, %v1231
      %v1296 = vsel %vm1161, %v1097, %v1232
      %v1297 = vsel %vm1162, %v1098, %v1233
      %v1298 = vsel %vm1163, %v1099, %v1234
      %v1299 = vsel %vm1164, %v1100, %v1235
      %v1300 = vsel %vm1165, %v1101, %v1236
      %v1301 = vsel %vm1166, %v1102, %v1237
      %v1302 = vsel %vm1167, %v1103, %v1238
      %v1303 = vsel %vm1168, %v1104, %v1239
      %v1304 = vsel %vm1169, %v1105, %v1240
      %v1305 = vsel %vm1170, %v1106, %v1241
      %v1306 = vsel %vm1171, %v1107, %v1242
      %v1307 = vsel %vm1172, %v1108, %v1243
      %v1308 = vsel %vm1173, %v1109, %v1244
      %v1309 = vsel %vm1174, %v1110, %v1245
      %v1310 = vsel %vm1175, %v1111, %v1246
      %v1311 = vsel %vm1176, %v1112, %v1247
      %v1312 = vsel %vm1177, %v1113, %v1248
      %v1313 = vsel %vm1178, %v1114, %v1249
      %v1314 = vsel %vm1179, %v1115, %v1250
      %v1315 = vsel %vm1180, %v1116, %v1251
      %v1316 = vsel %vm1181, %v1117, %v1252
      %v1317 = vsel %vm1182, %v1118, %v1253
      %v1318 = vsel %vm1183, %v1119, %v1254
      %v1319 = vsel %vm1184, %v1120, %v1255
      %v1320 = vsel %vm1185, %v1121, %v1256
      %v1321 = vsel %vm1186, %v1122, %v1257
      %v1322 = vsel %vm1187, %v1123, %v1258
      %v1323 = vsel %vm1188, %v1124, %v1259
      %v1324 = vpack.c.bf16 %v1261, %v1260
      %v1325 = vpack.c.bf16 %v1263, %v1262
      %v1326 = vpack.c.bf16 %v1265, %v1264
      %v1327 = vpack.c.bf16 %v1267, %v1266
      %v1328 = vpack.c.bf16 %v1269, %v1268
      %v1329 = vpack.c.bf16 %v1271, %v1270
      %v1330 = vpack.c.bf16 %v1273, %v1272
      %v1331 = vpack.c.bf16 %v1275, %v1274
      %v1332 = vpack.c.bf16 %v1277, %v1276
      %v1333 = vpack.c.bf16 %v1279, %v1278
      %v1334 = vpack.c.bf16 %v1281, %v1280
      %v1335 = vpack.c.bf16 %v1283, %v1282
      %v1336 = vpack.c.bf16 %v1285, %v1284
      %v1337 = vpack.c.bf16 %v1287, %v1286
      %v1338 = vpack.c.bf16 %v1289, %v1288
      %v1339 = vpack.c.bf16 %v1291, %v1290
      %v1340 = vpack.c.bf16 %v1293, %v1292
      %v1341 = vpack.c.bf16 %v1295, %v1294
      %v1342 = vpack.c.bf16 %v1297, %v1296
      %v1343 = vpack.c.bf16 %v1299, %v1298
      %v1344 = vpack.c.bf16 %v1301, %v1300
      %v1345 = vpack.c.bf16 %v1303, %v1302
      %v1346 = vpack.c.bf16 %v1305, %v1304
      %v1347 = vpack.c.bf16 %v1307, %v1306
      %v1348 = vpack.c.bf16 %v1309, %v1308
      %v1349 = vpack.c.bf16 %v1311, %v1310
      %v1350 = vpack.c.bf16 %v1313, %v1312
      %v1351 = vpack.c.bf16 %v1315, %v1314
      %v1352 = vpack.c.bf16 %v1317, %v1316
      %v1353 = vpack.c.bf16 %v1319, %v1318
      %v1354 = vpack.c.bf16 %v1321, %v1320
      %v1355 = vpack.c.bf16 %v1323, %v1322
      %v1388 = vunpack.c.l.b16 %v1324
      %v1389 = vunpack.c.h.b16 %v1324
      %v1390 = vunpack.c.l.b16 %v1325
      %v1391 = vunpack.c.h.b16 %v1325
      %v1392 = vunpack.c.l.b16 %v1326
      %v1393 = vunpack.c.h.b16 %v1326
      %v1394 = vunpack.c.l.b16 %v1327
      %v1395 = vunpack.c.h.b16 %v1327
      %v1396 = vunpack.c.l.b16 %v1328
      %v1397 = vunpack.c.h.b16 %v1328
      %v1398 = vunpack.c.l.b16 %v1329
      %v1399 = vunpack.c.h.b16 %v1329
      %v1400 = vunpack.c.l.b16 %v1330
      %v1401 = vunpack.c.h.b16 %v1330
      %v1402 = vunpack.c.l.b16 %v1331
      %v1403 = vunpack.c.h.b16 %v1331
      %v1404 = vunpack.c.l.b16 %v1332
      %v1405 = vunpack.c.h.b16 %v1332
      %v1406 = vunpack.c.l.b16 %v1333
      %v1407 = vunpack.c.h.b16 %v1333
      %v1408 = vunpack.c.l.b16 %v1334
      %v1409 = vunpack.c.h.b16 %v1334
      %v1410 = vunpack.c.l.b16 %v1335
      %v1411 = vunpack.c.h.b16 %v1335
      %v1412 = vunpack.c.l.b16 %v1336
      %v1413 = vunpack.c.h.b16 %v1336
      %v1414 = vunpack.c.l.b16 %v1337
      %v1415 = vunpack.c.h.b16 %v1337
      %v1416 = vunpack.c.l.b16 %v1338
      %v1417 = vunpack.c.h.b16 %v1338
      %v1418 = vunpack.c.l.b16 %v1339
      %v1419 = vunpack.c.h.b16 %v1339
      %v1420 = vunpack.c.l.b16 %v1340
      %v1421 = vunpack.c.h.b16 %v1340
      %v1422 = vunpack.c.l.b16 %v1341
      %v1423 = vunpack.c.h.b16 %v1341
      %v1424 = vunpack.c.l.b16 %v1342
      %v1425 = vunpack.c.h.b16 %v1342
      %v1426 = vunpack.c.l.b16 %v1343
      %v1427 = vunpack.c.h.b16 %v1343
      %v1428 = vunpack.c.l.b16 %v1344
      %v1429 = vunpack.c.h.b16 %v1344
      %v1430 = vunpack.c.l.b16 %v1345
      %v1431 = vunpack.c.h.b16 %v1345
      %v1432 = vunpack.c.l.b16 %v1346
      %v1433 = vunpack.c.h.b16 %v1346
      %v1434 = vunpack.c.l.b16 %v1347
      %v1435 = vunpack.c.h.b16 %v1347
      %v1436 = vunpack.c.l.b16 %v1348
      %v1437 = vunpack.c.h.b16 %v1348
      %v1438 = vunpack.c.l.b16 %v1349
      %v1439 = vunpack.c.h.b16 %v1349
      %v1440 = vunpack.c.l.b16 %v1350
      %v1441 = vunpack.c.h.b16 %v1350
      %v1442 = vunpack.c.l.b16 %v1351
      %v1443 = vunpack.c.h.b16 %v1351
      %v1444 = vunpack.c.l.b16 %v1352
      %v1445 = vunpack.c.h.b16 %v1352
      %v1446 = vunpack.c.l.b16 %v1353
      %v1447 = vunpack.c.h.b16 %v1353
      %v1448 = vunpack.c.l.b16 %v1354
      %v1449 = vunpack.c.h.b16 %v1354
      %v1450 = vunpack.c.l.b16 %v1355
      %v1451 = vunpack.c.h.b16 %v1355
      %v1452 = vpack.c.b16 %v1388, %v1388
      %v1453 = vpack.c.b16 %v1389, %v1389
      %v1454 = vpack.c.b16 %v1390, %v1390
      %v1455 = vpack.c.b16 %v1391, %v1391
      %v1456 = vpack.c.b16 %v1392, %v1392
      %v1457 = vpack.c.b16 %v1393, %v1393
      %v1458 = vpack.c.b16 %v1394, %v1394
      %v1459 = vpack.c.b16 %v1395, %v1395
      %v1460 = vpack.c.b16 %v1396, %v1396
      %v1461 = vpack.c.b16 %v1397, %v1397
      %v1462 = vpack.c.b16 %v1398, %v1398
      %v1463 = vpack.c.b16 %v1399, %v1399
      %v1464 = vpack.c.b16 %v1400, %v1400
      %v1465 = vpack.c.b16 %v1401, %v1401
      %v1466 = vpack.c.b16 %v1402, %v1402
      %v1467 = vpack.c.b16 %v1403, %v1403
      %v1468 = vpack.c.b16 %v1404, %v1404
      %v1469 = vpack.c.b16 %v1405, %v1405
      %v1470 = vpack.c.b16 %v1406, %v1406
      %v1471 = vpack.c.b16 %v1407, %v1407
      %v1472 = vpack.c.b16 %v1408, %v1408
      %v1473 = vpack.c.b16 %v1409, %v1409
      %v1474 = vpack.c.b16 %v1410, %v1410
      %v1475 = vpack.c.b16 %v1411, %v1411
      %v1476 = vpack.c.b16 %v1412, %v1412
      %v1477 = vpack.c.b16 %v1413, %v1413
      %v1478 = vpack.c.b16 %v1414, %v1414
      %v1479 = vpack.c.b16 %v1415, %v1415
      %v1480 = vpack.c.b16 %v1416, %v1416
      %v1481 = vpack.c.b16 %v1417, %v1417
      %v1482 = vpack.c.b16 %v1418, %v1418
      %v1483 = vpack.c.b16 %v1419, %v1419
      %v1484 = vpack.c.b16 %v1420, %v1420
      %v1485 = vpack.c.b16 %v1421, %v1421
      %v1486 = vpack.c.b16 %v1422, %v1422
      %v1487 = vpack.c.b16 %v1423, %v1423
      %v1488 = vpack.c.b16 %v1424, %v1424
      %v1489 = vpack.c.b16 %v1425, %v1425
      %v1490 = vpack.c.b16 %v1426, %v1426
      %v1491 = vpack.c.b16 %v1427, %v1427
      %v1492 = vpack.c.b16 %v1428, %v1428
      %v1493 = vpack.c.b16 %v1429, %v1429
      %v1494 = vpack.c.b16 %v1430, %v1430
      %v1495 = vpack.c.b16 %v1431, %v1431
      %v1496 = vpack.c.b16 %v1432, %v1432
      %v1497 = vpack.c.b16 %v1433, %v1433
      %v1498 = vpack.c.b16 %v1434, %v1434
      %v1499 = vpack.c.b16 %v1435, %v1435
      %v1500 = vpack.c.b16 %v1436, %v1436
      %v1501 = vpack.c.b16 %v1437, %v1437
      %v1502 = vpack.c.b16 %v1438, %v1438
      %v1503 = vpack.c.b16 %v1439, %v1439
      %v1504 = vpack.c.b16 %v1440, %v1440
      %v1505 = vpack.c.b16 %v1441, %v1441
      %v1506 = vpack.c.b16 %v1442, %v1442
      %v1507 = vpack.c.b16 %v1443, %v1443
      %v1508 = vpack.c.b16 %v1444, %v1444
      %v1509 = vpack.c.b16 %v1445, %v1445
      %v1510 = vpack.c.b16 %v1446, %v1446
      %v1511 = vpack.c.b16 %v1447, %v1447
      %v1512 = vpack.c.b16 %v1448, %v1448
      %v1513 = vpack.c.b16 %v1449, %v1449
      %v1514 = vpack.c.b16 %v1450, %v1450
      %v1515 = vpack.c.b16 %v1451, %v1451
      %vm1580 = vcmask 519168
      %1581 = vst.msk [vmem:[#allocation3] sm:$0xf] %vm1580, %v1452
      %1582 = vst.msk [vmem:[#allocation3 + $0x4] sm:$0xf] %vm1580, %v1453
      %1583 = vst.msk [vmem:[#allocation3 + $0x8] sm:$0xf] %vm1580, %v1454
      %1584 = vst.msk [vmem:[#allocation3 + $0xc] sm:$0xf] %vm1580, %v1455
      %1585 = vst.msk [vmem:[#allocation3 + $0x10] sm:$0xf] %vm1580, %v1456
      %1586 = vst.msk [vmem:[#allocation3 + $0x14] sm:$0xf] %vm1580, %v1457
      %1587 = vst.msk [vmem:[#allocation3 + $0x18] sm:$0xf] %vm1580, %v1458
      %1588 = vst.msk [vmem:[#allocation3 + $0x1c] sm:$0xf] %vm1580, %v1459
      %1589 = vst.msk [vmem:[#allocation3 + $0x20] sm:$0xf] %vm1580, %v1460
      %1590 = vst.msk [vmem:[#allocation3 + $0x24] sm:$0xf] %vm1580, %v1461
      %1591 = vst.msk [vmem:[#allocation3 + $0x28] sm:$0xf] %vm1580, %v1462
      %1592 = vst.msk [vmem:[#allocation3 + $0x2c] sm:$0xf] %vm1580, %v1463
      %1593 = vst.msk [vmem:[#allocation3 + $0x30] sm:$0xf] %vm1580, %v1464
      %1594 = vst.msk [vmem:[#allocation3 + $0x34] sm:$0xf] %vm1580, %v1465
      %1595 = vst.msk [vmem:[#allocation3 + $0x38] sm:$0xf] %vm1580, %v1466
      %1596 = vst.msk [vmem:[#allocation3 + $0x3c] sm:$0xf] %vm1580, %v1467
      %1597 = vst.msk [vmem:[#allocation3 + $0x40] sm:$0xf] %vm1580, %v1468
      %1598 = vst.msk [vmem:[#allocation3 + $0x44] sm:$0xf] %vm1580, %v1469
      %1599 = vst.msk [vmem:[#allocation3 + $0x48] sm:$0xf] %vm1580, %v1470
      %1600 = vst.msk [vmem:[#allocation3 + $0x4c] sm:$0xf] %vm1580, %v1471
      %1601 = vst.msk [vmem:[#allocation3 + $0x50] sm:$0xf] %vm1580, %v1472
      %1602 = vst.msk [vmem:[#allocation3 + $0x54] sm:$0xf] %vm1580, %v1473
      %1603 = vst.msk [vmem:[#allocation3 + $0x58] sm:$0xf] %vm1580, %v1474
      %1604 = vst.msk [vmem:[#allocation3 + $0x5c] sm:$0xf] %vm1580, %v1475
      %1605 = vst.msk [vmem:[#allocation3 + $0x60] sm:$0xf] %vm1580, %v1476
      %1606 = vst.msk [vmem:[#allocation3 + $0x64] sm:$0xf] %vm1580, %v1477
      %1607 = vst.msk [vmem:[#allocation3 + $0x68] sm:$0xf] %vm1580, %v1478
      %1608 = vst.msk [vmem:[#allocation3 + $0x6c] sm:$0xf] %vm1580, %v1479
      %1609 = vst.msk [vmem:[#allocation3 + $0x70] sm:$0xf] %vm1580, %v1480
      %1610 = vst.msk [vmem:[#allocation3 + $0x74] sm:$0xf] %vm1580, %v1481
      %1611 = vst.msk [vmem:[#allocation3 + $0x78] sm:$0xf] %vm1580, %v1482
      %1612 = vst.msk [vmem:[#allocation3 + $0x7c] sm:$0xf] %vm1580, %v1483
      %1613 = vst.msk [vmem:[#allocation3 + $0x80] sm:$0xf] %vm1580, %v1484
      %1614 = vst.msk [vmem:[#allocation3 + $0x84] sm:$0xf] %vm1580, %v1485
      %1615 = vst.msk [vmem:[#allocation3 + $0x88] sm:$0xf] %vm1580, %v1486
      %1616 = vst.msk [vmem:[#allocation3 + $0x8c] sm:$0xf] %vm1580, %v1487
      %1617 = vst.msk [vmem:[#allocation3 + $0x90] sm:$0xf] %vm1580, %v1488
      %1618 = vst.msk [vmem:[#allocation3 + $0x94] sm:$0xf] %vm1580, %v1489
      %1619 = vst.msk [vmem:[#allocation3 + $0x98] sm:$0xf] %vm1580, %v1490
      %1620 = vst.msk [vmem:[#allocation3 + $0x9c] sm:$0xf] %vm1580, %v1491
      %1621 = vst.msk [vmem:[#allocation3 + $0xa0] sm:$0xf] %vm1580, %v1492
      %1622 = vst.msk [vmem:[#allocation3 + $0xa4] sm:$0xf] %vm1580, %v1493
      %1623 = vst.msk [vmem:[#allocation3 + $0xa8] sm:$0xf] %vm1580, %v1494
      %1624 = vst.msk [vmem:[#allocation3 + $0xac] sm:$0xf] %vm1580, %v1495
      %1625 = vst.msk [vmem:[#allocation3 + $0xb0] sm:$0xf] %vm1580, %v1496
      %1626 = vst.msk [vmem:[#allocation3 + $0xb4] sm:$0xf] %vm1580, %v1497
      %1627 = vst.msk [vmem:[#allocation3 + $0xb8] sm:$0xf] %vm1580, %v1498
      %1628 = vst.msk [vmem:[#allocation3 + $0xbc] sm:$0xf] %vm1580, %v1499
      %1629 = vst.msk [vmem:[#allocation3 + $0xc0] sm:$0xf] %vm1580, %v1500
      %1630 = vst.msk [vmem:[#allocation3 + $0xc4] sm:$0xf] %vm1580, %v1501
      %1631 = vst.msk [vmem:[#allocation3 + $0xc8] sm:$0xf] %vm1580, %v1502
      %1632 = vst.msk [vmem:[#allocation3 + $0xcc] sm:$0xf] %vm1580, %v1503
      %1633 = vst.msk [vmem:[#allocation3 + $0xd0] sm:$0xf] %vm1580, %v1504
      %1634 = vst.msk [vmem:[#allocation3 + $0xd4] sm:$0xf] %vm1580, %v1505
      %1635 = vst.msk [vmem:[#allocation3 + $0xd8] sm:$0xf] %vm1580, %v1506
      %1636 = vst.msk [vmem:[#allocation3 + $0xdc] sm:$0xf] %vm1580, %v1507
      %1637 = vst.msk [vmem:[#allocation3 + $0xe0] sm:$0xf] %vm1580, %v1508
      %1638 = vst.msk [vmem:[#allocation3 + $0xe4] sm:$0xf] %vm1580, %v1509
      %1639 = vst.msk [vmem:[#allocation3 + $0xe8] sm:$0xf] %vm1580, %v1510
      %1640 = vst.msk [vmem:[#allocation3 + $0xec] sm:$0xf] %vm1580, %v1511
      %1641 = vst.msk [vmem:[#allocation3 + $0xf0] sm:$0xf] %vm1580, %v1512
      %1642 = vst.msk [vmem:[#allocation3 + $0xf4] sm:$0xf] %vm1580, %v1513
      %1643 = vst.msk [vmem:[#allocation3 + $0xf8] sm:$0xf] %vm1580, %v1514
      %1644 = vst.msk [vmem:[#allocation3 + $0xfc] sm:$0xf] %vm1580, %v1515
    $region29: #{conv3x3.1} parent=1 // pred_fallthru
      _
    // Predicated region
    $region30: #{conv3x3.1} parent=1 // pred_check
      _
    $region31: #{conv3x3.1} parent=1 // pred_check_branch
      %1646 = sbr.rel (0) target = $region33
    $region32: #{conv3x3.1} parent=1 // pred_region
      %s1648 = ssub.s32 4096, 4096
      %1649 = vsyncadd [#allocation4], %s1648
      %s1650 = sshll.u32 [#allocation3], 4
      %s1651 = int_to_ptr.vmem [resolvable:$true] %s1650
      %1656 = dma.vmem_to_hbm [thread:$0]  %s1651, 4096, %s5, [#allocation4], 64, 64, 4
    $region33: #{conv3x3.1} parent=1 // pred_fallthru
      _
    // Predicated region
    $region34: #{conv3x3.1} parent=1 // pred_check
      _
    $region35: #{conv3x3.1} parent=1 // pred_check_branch
      %1658 = sbr.rel (0) target = $region37
    $region36: #{conv3x3.1} parent=1 // pred_region
      %1659 = dma.done [#allocation4], 4096
    $region37: #{conv3x3.1} parent=1 // pred_fallthru
      _
    %1660 = vsyncpa [#allocation4], 1

</llo_original>
